<compile_context>
chip_gen: v7x
topology: tpu7x:2x2x1
jax: 0.10.0
libtpu: 0.0.40
codegen_flags: <defaults>
</compile_context>

<pallas_src>
import functools

import jax
import jax.numpy as jnp
from jax.experimental import pallas as pl
from jax.experimental.pallas import tpu as pltpu


# ---------------------------------------------------------------------------
# Kernel 1: Conv3d(k=3, s=1, p=1) + bias + MaxPool3d(2) + BN partial stats.
#
# Grid = (N, Dp, 4).  Step (n, dp, kd4) loads padded depth slice 2*dp + kd4 as
# a 2-D slab (rows = flattened padded (h, w), channels-last).  The slab
# contributes depth-tap kd4 to conv-output depth 2*dp (acc0) and depth-tap
# kd4-1 to conv-output depth 2*dp+1 (acc1).  Row r = h*(W+2) + w; columns
# w in {W, W+1} are over-read junk and are dropped by the pooling epilogue.
# ---------------------------------------------------------------------------
def conv_pool_kernel(x_ref, w_ref, b_ref, out_ref, stat_ref, acc0_ref, acc1_ref,
                     *, H, W):
    Wpad = W + 2
    L = H * Wpad                    # rows per accumulator
    Hp, Wp = H // 2, W // 2
    kd4 = pl.program_id(2)

    # Fused im2col: one (L, 9*Cin) lhs -> a single large-K MXU matmul per tap.
    lhs = jnp.concatenate(
        [x_ref[pl.ds(kh * Wpad + kw, L), :] for kh in range(3) for kw in range(3)],
        axis=-1)

    def tap_dot(kd):                # kd is a static Python int
        return jnp.dot(lhs, w_ref[kd], preferred_element_type=jnp.float32)

    @pl.when(kd4 == 0)
    def _():
        acc0_ref[...] = tap_dot(0)                      # init slot 0

    @pl.when(kd4 == 1)
    def _():
        acc0_ref[...] += tap_dot(1)
        acc1_ref[...] = tap_dot(0)                      # init slot 1

    @pl.when(kd4 == 2)
    def _():
        acc0_ref[...] += tap_dot(2)
        acc1_ref[...] += tap_dot(1)

    @pl.when(kd4 == 3)
    def _():
        acc1_ref[...] += tap_dot(2)

        # ---- fused MaxPool3d(2) + bias + BN partial sums (vectorized) ----
        z = jnp.maximum(acc0_ref[...], acc1_ref[...])   # depth pool, (L, Cout)
        Cout = z.shape[-1]
        # L = H * (Wp+1) * 2 : split rows into (h, w-pair, parity).
        z = z.reshape(H, Wp + 1, 2, Cout)
        z = jnp.max(z, axis=2)[:, :Wp, :]               # w pool, drop junk pair
        z = jnp.max(z.reshape(Hp, 2, Wp, Cout), axis=1)  # h pool -> (Hp, Wp, Cout)
        pooled = z.reshape(Hp * Wp, Cout) + b_ref[...]   # conv bias (1, Cout)

        out_ref[...] = pooled
        s_sum = jnp.sum(pooled, axis=0, keepdims=True)
        s_sq = jnp.sum(pooled * pooled, axis=0, keepdims=True)
        stat_ref[...] = jnp.concatenate([s_sum, s_sq], axis=0)   # (2, Cout)


def conv_pool_pallas(xpf, w_grp, bias, *, D, H, W):
    N = xpf.shape[0]
    Cin = xpf.shape[-1]
    Cout = w_grp.shape[-1]
    Dp, Hp, Wp = D // 2, H // 2, W // 2
    PR = (H + 3) * (W + 2)          # padded (h, w) rows (+1 slack h row)
    L = H * (W + 2)
    HWp = Hp * Wp

    return pl.pallas_call(
        functools.partial(conv_pool_kernel, H=H, W=W),
        out_shape=(
            jax.ShapeDtypeStruct((N, Dp, HWp, Cout), jnp.float32),   # pooled
            jax.ShapeDtypeStruct((N, Dp, 2, Cout), jnp.float32),     # sum/sumsq
        ),
        grid_spec=pltpu.PrefetchScalarGridSpec(
            num_scalar_prefetch=0,
            grid=(N, Dp, 4),
            in_specs=[
                pl.BlockSpec((None, None, PR, Cin),
                             lambda n, dp, k: (n, 2 * dp + k, 0, 0)),
                pl.BlockSpec((3, 9 * Cin, Cout), lambda n, dp, k: (0, 0, 0)),
                pl.BlockSpec((1, Cout), lambda n, dp, k: (0, 0)),
            ],
            out_specs=[
                pl.BlockSpec((None, None, HWp, Cout),
                             lambda n, dp, k: (n, dp, 0, 0)),
                pl.BlockSpec((None, None, 2, Cout),
                             lambda n, dp, k: (n, dp, 0, 0)),
            ],
            scratch_shapes=[
                pltpu.VMEM((L, Cout), jnp.float32),   # acc for conv depth 2*dp
                pltpu.VMEM((L, Cout), jnp.float32),   # acc for conv depth 2*dp+1
            ],
        ),
        compiler_params=pltpu.CompilerParams(
            dimension_semantics=("parallel", "parallel", "arbitrary"),
            vmem_limit_bytes=48 * 1024 * 1024,
        ),
    )(xpf, w_grp, bias)


# ---------------------------------------------------------------------------
# Kernel 2: Linear layer with the BatchNorm affine fused in.  K-tiled over the
# reduction (F) axis with a VMEM accumulator; the weight streams tile-by-tile.
# Leading grid axis splits out_dim (parallel; used when out_dim >= 256).
# ---------------------------------------------------------------------------
def dense_kernel(a_ref, scale_ref, shift_ref, w_ref, b_ref, o_ref, acc_ref):
    k = pl.program_id(1)
    a = a_ref[...] * scale_ref[...] + shift_ref[...]    # fused BatchNorm affine
    contrib = jnp.dot(a, w_ref[...], preferred_element_type=jnp.float32)

    @pl.when(k == 0)
    def _():
        acc_ref[...] = contrib

    @pl.when(k > 0)
    def _():
        acc_ref[...] += contrib

    @pl.when(k == pl.num_programs(1) - 1)
    def _():
        o_ref[...] = acc_ref[...] + b_ref[...]


def _pick_tile_f(F):
    # Large K tiles amortize the ~0.35us per-grid-step overhead against the
    # weight DMA; capped so the double-buffered weight tile fits v7x's 64 MiB.
    for t in (16384, 8192, 4096, 2048, 1024, 512, 256, 128):
        if F % t == 0:
            return t
    return F


def _pick_out_tile(out_dim):
    return 128 if out_dim % 256 == 0 else out_dim


def dense_pallas(a, scale_f, shift_f, w, b, *, tile_f, tile_out):
    Nrow, F = a.shape
    out_dim = w.shape[1]
    return pl.pallas_call(
        dense_kernel,
        out_shape=jax.ShapeDtypeStruct((Nrow, out_dim), jnp.float32),
        grid_spec=pltpu.PrefetchScalarGridSpec(
            num_scalar_prefetch=0,
            grid=(out_dim // tile_out, F // tile_f),
            in_specs=[
                pl.BlockSpec((Nrow, tile_f), lambda j, k: (0, k)),
                pl.BlockSpec((1, tile_f), lambda j, k: (0, k)),
                pl.BlockSpec((1, tile_f), lambda j, k: (0, k)),
                pl.BlockSpec((tile_f, tile_out), lambda j, k: (k, j)),
                pl.BlockSpec((1, tile_out), lambda j, k: (0, j)),
            ],
            out_specs=pl.BlockSpec((Nrow, tile_out), lambda j, k: (0, j)),
            scratch_shapes=[pltpu.VMEM((Nrow, tile_out), jnp.float32)],
        ),
        compiler_params=pltpu.CompilerParams(
            dimension_semantics=("parallel", "arbitrary"),
            vmem_limit_bytes=48 * 1024 * 1024,
        ),
    )(a, scale_f, shift_f, w, b)


# ---------------------------------------------------------------------------
# Parameter preparation (done ONCE, hoisted out of the forward path):
#  - conv weight -> (3 depth-taps, 9*Cin, Cout), inner order (kh, kw, cin)
#  - dense weight permuted so our channels-last (dp, hp, wp, c) flatten matches
#    PyTorch's x.view(N, -1) (c, dp, hp, wp) order, then transposed to (F, out).
# ---------------------------------------------------------------------------
def prepare_params(conv_w, conv_b, gamma, beta, dense_w, dense_b, pooled_dims):
    Cout, Cin = conv_w.shape[0], conv_w.shape[1]
    Dp, Hp, Wp = pooled_dims
    out_dim, F = dense_w.shape
    # (Cout, Cin, kd, kh, kw) -> (kd, kh, kw, Cin, Cout) -> (3, 9*Cin, Cout)
    w_grp = jnp.transpose(conv_w, (2, 3, 4, 1, 0)).reshape(3, 9 * Cin, Cout)
    wk = jnp.transpose(
        dense_w.reshape(out_dim, Cout, Dp, Hp, Wp), (2, 3, 4, 1, 0)
    ).reshape(F, out_dim)
    return dict(
        w_grp=w_grp,
        conv_b=conv_b.reshape(1, Cout),
        gamma=gamma,
        beta=beta,
        wk=wk,
        dense_b=dense_b.reshape(1, out_dim),
    )


# ---------------------------------------------------------------------------
# Full forward.
# ---------------------------------------------------------------------------
def bottleneck_forward(x_ncdhw, params):
    N, Cin, D, H, W = x_ncdhw.shape
    Cout = params["w_grp"].shape[-1]
    assert D % 2 == 0 and H % 2 == 0 and W % 2 == 0
    Dp, Hp, Wp = D // 2, H // 2, W // 2

    # Channels-last + halo padding (D,H,W by 1; one extra slack H row for the
    # flattened-row over-read); the (h, w) plane is flattened to rows.
    x = jnp.transpose(x_ncdhw, (0, 2, 3, 4, 1))                     # NDHWC
    xp = jnp.pad(x, ((0, 0), (1, 1), (1, 2), (1, 1), (0, 0)))
    xpf = xp.reshape(N, D + 2, (H + 3) * (W + 2), Cin)

    pooled, stats = conv_pool_pallas(
        xpf, params["w_grp"], params["conv_b"], D=D, H=H, W=W)

    # Global BatchNorm statistics from per-(n, dp) partial sums (tiny).
    cnt = N * Dp * Hp * Wp
    ssum = jnp.sum(stats[:, :, 0, :], axis=(0, 1))
    ssq = jnp.sum(stats[:, :, 1, :], axis=(0, 1))
    mean = ssum / cnt
    var = ssq / cnt - mean * mean                # biased, as PyTorch train()
    scale = params["gamma"] * jax.lax.rsqrt(var + 1e-5)
    shift = params["beta"] - mean * scale

    # Per-feature scale/shift in the channels-last flatten order (dp,hp,wp,c);
    # the BN affine itself is applied inside the dense kernel.
    F = Cout * Dp * Hp * Wp
    flat = pooled.reshape(N, F)
    scale_f = jnp.broadcast_to(scale.reshape(1, Cout),
                               (Dp * Hp * Wp, Cout)).reshape(1, F)
    shift_f = jnp.broadcast_to(shift.reshape(1, Cout),
                               (Dp * Hp * Wp, Cout)).reshape(1, F)

    return dense_pallas(flat, scale_f, shift_f, params["wk"], params["dense_b"],
                        tile_f=_pick_tile_f(F),
                        tile_out=_pick_out_tile(params["wk"].shape[1]))


# ---------------------------------------------------------------------------
# Pure-JAX reference (NCDHW, PyTorch semantics) for verification.
# ---------------------------------------------------------------------------
def bottleneck_reference(x, conv_w, conv_b, gamma, beta, dense_w, dense_b):
    y = jax.lax.conv_general_dilated(
        x, conv_w, window_strides=(1, 1, 1),
        padding=((1, 1), (1, 1), (1, 1)),
        dimension_numbers=("NCDHW", "OIDHW", "NCDHW"),
    )
    y = y + conv_b.reshape(1, -1, 1, 1, 1)
    y = jax.lax.reduce_window(
        y, -jnp.inf, jax.lax.max, (1, 1, 2, 2, 2), (1, 1, 2, 2, 2), "VALID"
    )
    mean = jnp.mean(y, axis=(0, 2, 3, 4), keepdims=True)
    var = jnp.mean(jnp.square(y - mean), axis=(0, 2, 3, 4), keepdims=True)
    y = (y - mean) * jax.lax.rsqrt(var + 1e-5) * gamma.reshape(1, -1, 1, 1, 1) \
        + beta.reshape(1, -1, 1, 1, 1)
    flat = y.reshape(y.shape[0], -1)
    return flat @ dense_w.T + dense_b


if __name__ == "__main__":
    # Scaled-down analogue of Bottleneck(channel=64, out_dim=128): the module's
    # Linear(in = channel * (channel//2)**3) implies spatial size == channel
    # and conv out-channels == channel, so keep those relations with channel=8.
    channel = 8
    out_dim = 16
    N = 2
    D = H = W = channel
    Cin = Cout = channel

    key = jax.random.PRNGKey(0)
    ks = jax.random.split(key, 7)
    conv_w = 0.1 * jax.random.normal(ks[0], (Cout, Cin, 3, 3, 3), jnp.float32)
    conv_b = 0.1 * jax.random.normal(ks[1], (Cout,), jnp.float32)
    gamma = 1.0 + 0.1 * jax.random.normal(ks[2], (Cout,), jnp.float32)
    beta = 0.1 * jax.random.normal(ks[3], (Cout,), jnp.float32)
    Fin = channel * (channel // 2) ** 3
    dense_w = 0.05 * jax.random.normal(ks[4], (out_dim, Fin), jnp.float32)
    dense_b = 0.05 * jax.random.normal(ks[5], (out_dim,), jnp.float32)
    x = jax.random.normal(ks[6], (N, Cin, D, H, W), jnp.float32)

    params = prepare_params(conv_w, conv_b, gamma, beta, dense_w, dense_b,
                            (D // 2, H // 2, W // 2))

    out = jax.block_until_ready(bottleneck_forward(x, params))
    assert out.shape == (N, out_dim)

    ref = jax.block_until_ready(
        bottleneck_reference(x, conv_w, conv_b, gamma, beta, dense_w, dense_b)
    )
    err = float(jnp.max(jnp.abs(out - ref)))
    assert jnp.allclose(out, ref, atol=1e-4, rtol=1e-4), (
        f"mismatch vs reference: max abs err {err}"
    )
    print("KERNEL_OK")
</pallas_src>

<mosaic_0001>
module attributes {stable_mosaic.version = 11 : i64} {
  func.func @conv_pool_kernel(%arg0: i32, %arg1: i32, %arg2: i32, %arg3: memref<1x1x110x8xf32, #tpu.memory_space<vmem>>, %arg4: memref<3x72x8xf32, #tpu.memory_space<vmem>>, %arg5: memref<1x8xf32, #tpu.memory_space<vmem>>, %arg6: memref<1x1x16x8xf32, #tpu.memory_space<vmem>>, %arg7: memref<1x1x2x8xf32, #tpu.memory_space<vmem>>, %arg8: memref<80x8xf32, #tpu.memory_space<vmem>>, %arg9: memref<80x8xf32, #tpu.memory_space<vmem>>) attributes {dimension_semantics = [#tpu.dimension_semantics<parallel>, #tpu.dimension_semantics<parallel>, #tpu.dimension_semantics<arbitrary>], iteration_bounds = array<i64: 2, 4, 4>, scalar_prefetch = 0 : i64, scratch_operands = 2 : i64, tpu.core_type = #tpu.core_type<tc>, window_params = [{transform_indices = @transform_0, window_bounds = array<i64: 1, 1, 110, 8>}, {pipeline_mode = #tpu.pipeline_mode<synchronous>, transform_indices = @transform_1, window_bounds = array<i64: 3, 72, 8>}, {pipeline_mode = #tpu.pipeline_mode<synchronous>, transform_indices = @transform_2, window_bounds = array<i64: 1, 8>}, {transform_indices = @transform_3, window_bounds = array<i64: 1, 1, 16, 8>}, {transform_indices = @transform_4, window_bounds = array<i64: 1, 1, 2, 8>}]} {
    %c0 = arith.constant 0 : index
    %c0_0 = arith.constant 0 : index
    %c0_1 = arith.constant 0 : index
    %c0_2 = arith.constant 0 : index
    %0 = vector.load %arg3[%c0, %c0_0, %c0_1, %c0_2] : memref<1x1x110x8xf32, #tpu.memory_space<vmem>>, vector<1x1x80x8xf32>
    %1 = vector.shape_cast %0 : vector<1x1x80x8xf32> to vector<80x8xf32>
    %c0_3 = arith.constant 0 : index
    %c0_4 = arith.constant 0 : index
    %c1 = arith.constant 1 : index
    %c0_5 = arith.constant 0 : index
    %2 = vector.load %arg3[%c0_3, %c0_4, %c1, %c0_5] : memref<1x1x110x8xf32, #tpu.memory_space<vmem>>, vector<1x1x80x8xf32>
    %3 = vector.shape_cast %2 : vector<1x1x80x8xf32> to vector<80x8xf32>
    %c0_6 = arith.constant 0 : index
    %c0_7 = arith.constant 0 : index
    %c2 = arith.constant 2 : index
    %c0_8 = arith.constant 0 : index
    %4 = vector.load %arg3[%c0_6, %c0_7, %c2, %c0_8] : memref<1x1x110x8xf32, #tpu.memory_space<vmem>>, vector<1x1x80x8xf32>
    %5 = vector.shape_cast %4 : vector<1x1x80x8xf32> to vector<80x8xf32>
    %c0_9 = arith.constant 0 : index
    %c0_10 = arith.constant 0 : index
    %c10 = arith.constant 10 : index
    %c0_11 = arith.constant 0 : index
    %6 = vector.load %arg3[%c0_9, %c0_10, %c10, %c0_11] : memref<1x1x110x8xf32, #tpu.memory_space<vmem>>, vector<1x1x80x8xf32>
    %7 = vector.shape_cast %6 : vector<1x1x80x8xf32> to vector<80x8xf32>
    %c0_12 = arith.constant 0 : index
    %c0_13 = arith.constant 0 : index
    %c11 = arith.constant 11 : index
    %c0_14 = arith.constant 0 : index
    %8 = vector.load %arg3[%c0_12, %c0_13, %c11, %c0_14] : memref<1x1x110x8xf32, #tpu.memory_space<vmem>>, vector<1x1x80x8xf32>
    %9 = vector.shape_cast %8 : vector<1x1x80x8xf32> to vector<80x8xf32>
    %c0_15 = arith.constant 0 : index
    %c0_16 = arith.constant 0 : index
    %c12 = arith.constant 12 : index
    %c0_17 = arith.constant 0 : index
    %10 = vector.load %arg3[%c0_15, %c0_16, %c12, %c0_17] : memref<1x1x110x8xf32, #tpu.memory_space<vmem>>, vector<1x1x80x8xf32>
    %11 = vector.shape_cast %10 : vector<1x1x80x8xf32> to vector<80x8xf32>
    %c0_18 = arith.constant 0 : index
    %c0_19 = arith.constant 0 : index
    %c20 = arith.constant 20 : index
    %c0_20 = arith.constant 0 : index
    %12 = vector.load %arg3[%c0_18, %c0_19, %c20, %c0_20] : memref<1x1x110x8xf32, #tpu.memory_space<vmem>>, vector<1x1x80x8xf32>
    %13 = vector.shape_cast %12 : vector<1x1x80x8xf32> to vector<80x8xf32>
    %c0_21 = arith.constant 0 : index
    %c0_22 = arith.constant 0 : index
    %c21 = arith.constant 21 : index
    %c0_23 = arith.constant 0 : index
    %14 = vector.load %arg3[%c0_21, %c0_22, %c21, %c0_23] : memref<1x1x110x8xf32, #tpu.memory_space<vmem>>, vector<1x1x80x8xf32>
    %15 = vector.shape_cast %14 : vector<1x1x80x8xf32> to vector<80x8xf32>
    %c0_24 = arith.constant 0 : index
    %c0_25 = arith.constant 0 : index
    %c22 = arith.constant 22 : index
    %c0_26 = arith.constant 0 : index
    %16 = vector.load %arg3[%c0_24, %c0_25, %c22, %c0_26] : memref<1x1x110x8xf32, #tpu.memory_space<vmem>>, vector<1x1x80x8xf32>
    %17 = vector.shape_cast %16 : vector<1x1x80x8xf32> to vector<80x8xf32>
    %18 = tpu.concatenate %1, %3, %5, %7, %9, %11, %13, %15, %17 in 1 : vector<80x8xf32>, vector<80x8xf32>, vector<80x8xf32>, vector<80x8xf32>, vector<80x8xf32>, vector<80x8xf32>, vector<80x8xf32>, vector<80x8xf32>, vector<80x8xf32> -> vector<80x72xf32>
    %c0_i32 = arith.constant 0 : i32
    %19 = arith.cmpi eq, %arg2, %c0_i32 : i32
    %20 = arith.extui %19 : i1 to i32
    %c0_i32_27 = arith.constant 0 : i32
    %21 = arith.cmpi ne, %20, %c0_i32_27 : i32
    scf.if %21 {
      %c0_31 = arith.constant 0 : index
      %c0_32 = arith.constant 0 : index
      %c0_33 = arith.constant 0 : index
      %31 = vector.load %arg4[%c0_31, %c0_32, %c0_33] : memref<3x72x8xf32, #tpu.memory_space<vmem>>, vector<1x72x8xf32>
      %32 = vector.shape_cast %31 : vector<1x72x8xf32> to vector<72x8xf32>
      %cst = arith.constant dense<0.000000e+00> : vector<80x8xf32>
      %33 = tpu.matmul %18, %32, %cst {dimension_numbers = #tpu.dot_dimension_numbers<[1], [0], [0], [1], [0, 0, 1, 1], [], []>} : vector<80x72xf32>, vector<72x8xf32>, vector<80x8xf32> -> vector<80x8xf32>
      %c0_34 = arith.constant 0 : index
      %c0_35 = arith.constant 0 : index
      %34 = vector.load %arg8[%c0_34, %c0_35] : memref<80x8xf32, #tpu.memory_space<vmem>>, vector<80x8xf32>
      tpu.vector_store %arg8[%c0_34, %c0_35], %33 {strides = array<i32>} : memref<80x8xf32, #tpu.memory_space<vmem>>, vector<80x8xf32>,
    } else {
    }
    %c1_i32 = arith.constant 1 : i32
    %22 = arith.cmpi eq, %arg2, %c1_i32 : i32
    %23 = arith.extui %22 : i1 to i32
    %c0_i32_28 = arith.constant 0 : i32
    %24 = arith.cmpi ne, %23, %c0_i32_28 : i32
    scf.if %24 {
      %c0_31 = arith.constant 0 : index
      %c0_32 = arith.constant 0 : index
      %31 = vector.load %arg8[%c0_31, %c0_32] : memref<80x8xf32, #tpu.memory_space<vmem>>, vector<80x8xf32>
      %c1_33 = arith.constant 1 : index
      %c0_34 = arith.constant 0 : index
      %c0_35 = arith.constant 0 : index
      %32 = vector.load %arg4[%c1_33, %c0_34, %c0_35] : memref<3x72x8xf32, #tpu.memory_space<vmem>>, vector<1x72x8xf32>
      %33 = vector.shape_cast %32 : vector<1x72x8xf32> to vector<72x8xf32>
      %cst = arith.constant dense<0.000000e+00> : vector<80x8xf32>
      %34 = tpu.matmul %18, %33, %cst {dimension_numbers = #tpu.dot_dimension_numbers<[1], [0], [0], [1], [0, 0, 1, 1], [], []>} : vector<80x72xf32>, vector<72x8xf32>, vector<80x8xf32> -> vector<80x8xf32>
      %35 = arith.addf %31, %34 : vector<80x8xf32>
      %c0_36 = arith.constant 0 : index
      %c0_37 = arith.constant 0 : index
      %36 = vector.load %arg8[%c0_36, %c0_37] : memref<80x8xf32, #tpu.memory_space<vmem>>, vector<80x8xf32>
      tpu.vector_store %arg8[%c0_36, %c0_37], %35 {strides = array<i32>} : memref<80x8xf32, #tpu.memory_space<vmem>>, vector<80x8xf32>,
      %c0_38 = arith.constant 0 : index
      %c0_39 = arith.constant 0 : index
      %c0_40 = arith.constant 0 : index
      %37 = vector.load %arg4[%c0_38, %c0_39, %c0_40] : memref<3x72x8xf32, #tpu.memory_space<vmem>>, vector<1x72x8xf32>
      %38 = vector.shape_cast %37 : vector<1x72x8xf32> to vector<72x8xf32>
      %cst_41 = arith.constant dense<0.000000e+00> : vector<80x8xf32>
      %39 = tpu.matmul %18, %38, %cst_41 {dimension_numbers = #tpu.dot_dimension_numbers<[1], [0], [0], [1], [0, 0, 1, 1], [], []>} : vector<80x72xf32>, vector<72x8xf32>, vector<80x8xf32> -> vector<80x8xf32>
      %c0_42 = arith.constant 0 : index
      %c0_43 = arith.constant 0 : index
      %40 = vector.load %arg9[%c0_42, %c0_43] : memref<80x8xf32, #tpu.memory_space<vmem>>, vector<80x8xf32>
      tpu.vector_store %arg9[%c0_42, %c0_43], %39 {strides = array<i32>} : memref<80x8xf32, #tpu.memory_space<vmem>>, vector<80x8xf32>,
    } else {
    }
    %c2_i32 = arith.constant 2 : i32
    %25 = arith.cmpi eq, %arg2, %c2_i32 : i32
    %26 = arith.extui %25 : i1 to i32
    %c0_i32_29 = arith.constant 0 : i32
    %27 = arith.cmpi ne, %26, %c0_i32_29 : i32
    scf.if %27 {
      %c0_31 = arith.constant 0 : index
      %c0_32 = arith.constant 0 : index
      %31 = vector.load %arg8[%c0_31, %c0_32] : memref<80x8xf32, #tpu.memory_space<vmem>>, vector<80x8xf32>
      %c2_33 = arith.constant 2 : index
      %c0_34 = arith.constant 0 : index
      %c0_35 = arith.constant 0 : index
      %32 = vector.load %arg4[%c2_33, %c0_34, %c0_35] : memref<3x72x8xf32, #tpu.memory_space<vmem>>, vector<1x72x8xf32>
      %33 = vector.shape_cast %32 : vector<1x72x8xf32> to vector<72x8xf32>
      %cst = arith.constant dense<0.000000e+00> : vector<80x8xf32>
      %34 = tpu.matmul %18, %33, %cst {dimension_numbers = #tpu.dot_dimension_numbers<[1], [0], [0], [1], [0, 0, 1, 1], [], []>} : vector<80x72xf32>, vector<72x8xf32>, vector<80x8xf32> -> vector<80x8xf32>
      %35 = arith.addf %31, %34 : vector<80x8xf32>
      %c0_36 = arith.constant 0 : index
      %c0_37 = arith.constant 0 : index
      %36 = vector.load %arg8[%c0_36, %c0_37] : memref<80x8xf32, #tpu.memory_space<vmem>>, vector<80x8xf32>
      tpu.vector_store %arg8[%c0_36, %c0_37], %35 {strides = array<i32>} : memref<80x8xf32, #tpu.memory_space<vmem>>, vector<80x8xf32>,
      %c0_38 = arith.constant 0 : index
      %c0_39 = arith.constant 0 : index
      %37 = vector.load %arg9[%c0_38, %c0_39] : memref<80x8xf32, #tpu.memory_space<vmem>>, vector<80x8xf32>
      %c1_40 = arith.constant 1 : index
      %c0_41 = arith.constant 0 : index
      %c0_42 = arith.constant 0 : index
      %38 = vector.load %arg4[%c1_40, %c0_41, %c0_42] : memref<3x72x8xf32, #tpu.memory_space<vmem>>, vector<1x72x8xf32>
      %39 = vector.shape_cast %38 : vector<1x72x8xf32> to vector<72x8xf32>
      %cst_43 = arith.constant dense<0.000000e+00> : vector<80x8xf32>
      %40 = tpu.matmul %18, %39, %cst_43 {dimension_numbers = #tpu.dot_dimension_numbers<[1], [0], [0], [1], [0, 0, 1, 1], [], []>} : vector<80x72xf32>, vector<72x8xf32>, vector<80x8xf32> -> vector<80x8xf32>
      %41 = arith.addf %37, %40 : vector<80x8xf32>
      %c0_44 = arith.constant 0 : index
      %c0_45 = arith.constant 0 : index
      %42 = vector.load %arg9[%c0_44, %c0_45] : memref<80x8xf32, #tpu.memory_space<vmem>>, vector<80x8xf32>
      tpu.vector_store %arg9[%c0_44, %c0_45], %41 {strides = array<i32>} : memref<80x8xf32, #tpu.memory_space<vmem>>, vector<80x8xf32>,
    } else {
    }
    %c3_i32 = arith.constant 3 : i32
    %28 = arith.cmpi eq, %arg2, %c3_i32 : i32
    %29 = arith.extui %28 : i1 to i32
    %c0_i32_30 = arith.constant 0 : i32
    %30 = arith.cmpi ne, %29, %c0_i32_30 : i32
    scf.if %30 {
      %c0_31 = arith.constant 0 : index
      %c0_32 = arith.constant 0 : index
      %31 = vector.load %arg9[%c0_31, %c0_32] : memref<80x8xf32, #tpu.memory_space<vmem>>, vector<80x8xf32>
      %c2_33 = arith.constant 2 : index
      %c0_34 = arith.constant 0 : index
      %c0_35 = arith.constant 0 : index
      %32 = vector.load %arg4[%c2_33, %c0_34, %c0_35] : memref<3x72x8xf32, #tpu.memory_space<vmem>>, vector<1x72x8xf32>
      %33 = vector.shape_cast %32 : vector<1x72x8xf32> to vector<72x8xf32>
      %cst = arith.constant dense<0.000000e+00> : vector<80x8xf32>
      %34 = tpu.matmul %18, %33, %cst {dimension_numbers = #tpu.dot_dimension_numbers<[1], [0], [0], [1], [0, 0, 1, 1], [], []>} : vector<80x72xf32>, vector<72x8xf32>, vector<80x8xf32> -> vector<80x8xf32>
      %35 = arith.addf %31, %34 : vector<80x8xf32>
      %c0_36 = arith.constant 0 : index
      %c0_37 = arith.constant 0 : index
      %36 = vector.load %arg9[%c0_36, %c0_37] : memref<80x8xf32, #tpu.memory_space<vmem>>, vector<80x8xf32>
      tpu.vector_store %arg9[%c0_36, %c0_37], %35 {strides = array<i32>} : memref<80x8xf32, #tpu.memory_space<vmem>>, vector<80x8xf32>,
      %c0_38 = arith.constant 0 : index
      %c0_39 = arith.constant 0 : index
      %37 = vector.load %arg8[%c0_38, %c0_39] : memref<80x8xf32, #tpu.memory_space<vmem>>, vector<80x8xf32>
      %c0_40 = arith.constant 0 : index
      %c0_41 = arith.constant 0 : index
      %38 = vector.load %arg9[%c0_40, %c0_41] : memref<80x8xf32, #tpu.memory_space<vmem>>, vector<80x8xf32>
      %39 = arith.maximumf %37, %38 : vector<80x8xf32>
      %40 = vector.shape_cast %39 : vector<80x8xf32> to vector<8x5x2x8xf32>
      %cst_42 = arith.constant dense<0xFF800000> : vector<8x5x8xf32>
      %41 = vector.multi_reduction <maximumf>, %40, %cst_42 [2] : vector<8x5x2x8xf32> to vector<8x5x8xf32>
      %42 = vector.extract_strided_slice %41 {offsets = [0, 0, 0], sizes = [8, 4, 8], strides = [1, 1, 1]} : vector<8x5x8xf32> to vector<8x4x8xf32>
      %43 = vector.shape_cast %42 : vector<8x4x8xf32> to vector<4x2x4x8xf32>
      %cst_43 = arith.constant dense<0xFF800000> : vector<4x4x8xf32>
      %44 = vector.multi_reduction <maximumf>, %43, %cst_43 [1] : vector<4x2x4x8xf32> to vector<4x4x8xf32>
      %45 = vector.shape_cast %44 : vector<4x4x8xf32> to vector<16x8xf32>
      %c0_44 = arith.constant 0 : index
      %c0_45 = arith.constant 0 : index
      %46 = vector.load %arg5[%c0_44, %c0_45] : memref<1x8xf32, #tpu.memory_space<vmem>>, vector<1x8xf32>
      %47 = vector.broadcast %46 : vector<1x8xf32> to vector<16x8xf32>
      %48 = arith.addf %45, %47 : vector<16x8xf32>
      %c0_46 = arith.constant 0 : index
      %c0_47 = arith.constant 0 : index
      %c0_48 = arith.constant 0 : index
      %c0_49 = arith.constant 0 : index
      %49 = vector.load %arg6[%c0_46, %c0_47, %c0_48, %c0_49] : memref<1x1x16x8xf32, #tpu.memory_space<vmem>>, vector<1x1x16x8xf32>
      %50 = vector.shape_cast %49 : vector<1x1x16x8xf32> to vector<16x8xf32>
      %51 = vector.shape_cast %48 : vector<16x8xf32> to vector<1x1x16x8xf32>
      tpu.vector_store %arg6[%c0_46, %c0_47, %c0_48, %c0_49], %51 {strides = array<i32>} : memref<1x1x16x8xf32, #tpu.memory_space<vmem>>, vector<1x1x16x8xf32>,
      %cst_50 = arith.constant dense<0.000000e+00> : vector<8xf32>
      %52 = vector.multi_reduction <add>, %48, %cst_50 [0] : vector<16x8xf32> to vector<8xf32>
      %53 = vector.shape_cast %52 : vector<8xf32> to vector<1x8xf32>
      %54 = arith.mulf %48, %48 : vector<16x8xf32>
      %cst_51 = arith.constant dense<0.000000e+00> : vector<8xf32>
      %55 = vector.multi_reduction <add>, %54, %cst_51 [0] : vector<16x8xf32> to vector<8xf32>
      %56 = vector.shape_cast %55 : vector<8xf32> to vector<1x8xf32>
      %57 = tpu.concatenate %53, %56 in 0 : vector<1x8xf32>, vector<1x8xf32> -> vector<2x8xf32>
      %c0_52 = arith.constant 0 : index
      %c0_53 = arith.constant 0 : index
      %c0_54 = arith.constant 0 : index
      %c0_55 = arith.constant 0 : index
      %58 = vector.load %arg7[%c0_52, %c0_53, %c0_54, %c0_55] : memref<1x1x2x8xf32, #tpu.memory_space<vmem>>, vector<1x1x2x8xf32>
      %59 = vector.shape_cast %58 : vector<1x1x2x8xf32> to vector<2x8xf32>
      %60 = vector.shape_cast %57 : vector<2x8xf32> to vector<1x1x2x8xf32>
      tpu.vector_store %arg7[%c0_52, %c0_53, %c0_54, %c0_55], %60 {strides = array<i32>} : memref<1x1x2x8xf32, #tpu.memory_space<vmem>>, vector<1x1x2x8xf32>,
    } else {
    }
    return
  }
  func.func @transform_0(%arg0: i32, %arg1: i32, %arg2: i32) -> (i32, i32, i32, i32) {
    %c2_i32 = arith.constant 2 : i32
    %0 = arith.muli %c2_i32, %arg1 : i32
    %1 = arith.addi %0, %arg2 : i32
    %c0_i32 = arith.constant 0 : i32
    %c0_i32_0 = arith.constant 0 : i32
    %c0_i32_1 = arith.constant 0 : i32
    return %arg0, %1, %c0_i32, %c0_i32_0 : i32, i32, i32, i32
  }
  func.func @transform_1(%arg0: i32, %arg1: i32, %arg2: i32) -> (i32, i32, i32) {
    %c0_i32 = arith.constant 0 : i32
    %c0_i32_0 = arith.constant 0 : i32
    %c0_i32_1 = arith.constant 0 : i32
    %c0_i32_2 = arith.constant 0 : i32
    return %c0_i32, %c0_i32_0, %c0_i32_1 : i32, i32, i32
  }
  func.func @transform_2(%arg0: i32, %arg1: i32, %arg2: i32) -> (i32, i32) {
    %c0_i32 = arith.constant 0 : i32
    %c0_i32_0 = arith.constant 0 : i32
    %c0_i32_1 = arith.constant 0 : i32
    return %c0_i32, %c0_i32_0 : i32, i32
  }
  func.func @transform_3(%arg0: i32, %arg1: i32, %arg2: i32) -> (i32, i32, i32, i32) {
    %c0_i32 = arith.constant 0 : i32
    %c0_i32_0 = arith.constant 0 : i32
    %c0_i32_1 = arith.constant 0 : i32
    return %arg0, %arg1, %c0_i32, %c0_i32_0 : i32, i32, i32, i32
  }
  func.func @transform_4(%arg0: i32, %arg1: i32, %arg2: i32) -> (i32, i32, i32, i32) {
    %c0_i32 = arith.constant 0 : i32
    %c0_i32_0 = arith.constant 0 : i32
    %c0_i32_1 = arith.constant 0 : i32
    return %arg0, %arg1, %c0_i32, %c0_i32_0 : i32, i32, i32, i32
  }
}

</mosaic_0001>

<llo_original>
// kernel: tpu_custom_call.1
$region0: #{tpu_custom_call.1}
  #allocation0 [shape = 'u32[]', space=smem, size = 0x4, offset = 0x4, fixed_abs, tag = 'smem constant byte address 0x4 - core index']
  #allocation1 [shape = 'u32[144,128]{1,0:T(1,128)}', space=vmem, size = 0x12000, scoped, tag = 'internal scratch']
  #allocation2 [shape = 'f32[80,8]{1,0:T(8,128)}', space=vmem, size = 0xa000, scoped, tag = 'scratch operand']
  #allocation3 [shape = 'f32[80,8]{1,0:T(8,128)}', space=vmem, size = 0xa000, scoped, tag = 'scratch operand']
  %s0 = inlined_call_operand.vmem [shape: f32[2,10,110,8], index: 0, kind: input, shape index: {}]
  %s1 = inlined_call_operand.vmem [shape: f32[3,72,8], index: 1, kind: input, shape index: {}]
  %s2 = inlined_call_operand.vmem [shape: f32[1,8], index: 2, kind: input, shape index: {}]
  %s3 = inlined_call_operand.vmem [shape: f32[2,4,16,8], index: 3, kind: output, shape index: {0}]
  %s4 = inlined_call_operand.hbm [shape: f32[2,4,2,8], index: 4, kind: output, shape index: {1}]
  %5 = xla_tuple %s3, %s4
  %s6 = sld [smem:[#allocation0]]
  $region69: #{tpu_custom_call.1} parent=0
    _
  %s8 = ssub.s32 1, %s6
  %s9 = scalar_select 0, %s8, %s6
  $region1: #{tpu_custom_call.1} parent=0
    #allocation4 [shape = 'u8[2048]{0}', space=vmem, size = 0x800, scoped, tag = 'output window, operand 1']
    #allocation5 [shape = 's32[2]{0}', space=sflag, size = 0x8, scoped, tag = 'scoped memory for tpu_custom_call.1']
    %10 = vsyncpa [#allocation5], 0
    %s11 = scalar_lea.sflag [#allocation5], 1
    %12 = vsyncpa %s11, 0
    loop: start=0, step=1, limit=34
    $region2: #{tpu_custom_call.1} parent=1 // loop_pre_header
      _
    $region3: #{tpu_custom_call.1} parent=1 // loop_header
      %s14 = sphi 0, %s18
      %p15 = scmp.ge.s32.totalorder %s14, 34
      %s21 = sphi 0, %s40
      %s22 = sphi 0, %s36
      %s23 = sphi 0, %s32
      %s24 = sphi 0, %s21
      %s25 = sphi 0, %s22
      %s26 = sphi 0, %s23
      %s27 = sphi 0, %s24
      %s28 = sphi 0, %s25
      %s29 = sphi 0, %s26
      %s49 = sphi 0, %s51
      %s52 = sphi 0, %s49
      %s53 = sphi 0, %s52
      %s69 = sphi 0, %s53
      %s73 = sphi 0, %s73
      %s75 = sphi 0, %s73
      %s76 = sphi 0, %s75
      %s90 = sphi 0, %s76
      %s94 = sphi 0, %s94
      %s96 = sphi 0, %s94
      %s97 = sphi 0, %s96
      %s111 = sphi 0, %s97
      %s119 = sphi 0, %s121
      %s122 = sphi 0, %s119
      %s123 = sphi 0, %s122
      %s139 = sphi 0, %s123
      %s147 = sphi 0, %s149
      %s150 = sphi 0, %s147
      %s151 = sphi 0, %s150
      %s167 = sphi 0, %s151
    $region4: #{tpu_custom_call.1} parent=1 // loop_header_branch
      %17 = sbr.rel (%p15) target = $region8
    $region5: #{tpu_custom_call.1} parent=1 // loop_body
      %s19 = ssub.s32 %s14, 1
      %s20 = ssub.s32 %s14, 2
      %s30 = sadd.s32 1, %s23
      %p31 = scmp.ge.s32.totalorder %s30, 4
      %s32 = scalar_select %p31, 0, %s30
      %s33 = sadd.s32 1, %s22
      %s34 = scalar_select %p31, %s33, %s22
      %p35 = scmp.ge.s32.totalorder %s34, 4
      %s36 = scalar_select %p35, 0, %s34
      %s37 = sadd.s32 1, %s21
      %s38 = scalar_select %p35, %s37, %s21
      %p39 = scmp.ge.s32.totalorder %s38, 2
      %s40 = scalar_select %p39, 0, %s38
      %s41 = smul.u32 %s22, 2
      %s42 = sadd.s32 %s41, %s23
      %s43 = smul.u32 %s36, 2
      %s44 = sadd.s32 %s43, %s32
      %s45 = ssub.s32 %s21, %s40
      %s46 = ssub.s32 %s42, %s44
      %s47 = sor.u32 %s45, %s46
      %p48 = scmp.eq.s32.totalorder %s47, 0
      %s50 = sadd.s32 %s49, 1
      %s51 = scalar_select %p48, %s49, %s50
      %p54 = pneg %p48
      %p55 = scmp.eq.s32.totalorder %s14, 31
      %p56 = por %p54, %p55
      %p57 = scmp.ne.s32.totalorder %s49, %s52
      %p58 = scmp.eq.s32.totalorder %s14, 0
      %p59 = por %p57, %p58
      %p60 = scmp.ne.s32.totalorder %s49, %s52
      %p61 = scmp.eq.s32.totalorder %s19, 31
      %p62 = por %p60, %p61
      %p63 = scmp.ne.s32.totalorder %s52, %s53
      %p64 = scmp.eq.s32.totalorder %s19, 0
      %p65 = por %p63, %p64
      %p66 = scmp.ne.s32.totalorder %s52, %s53
      %p67 = scmp.eq.s32.totalorder %s20, 31
      %p68 = por %p66, %p67
      %p70 = scmp.ne.s32.totalorder %s53, %s69
      %p71 = scmp.eq.s32.totalorder %s20, 0
      %p72 = por %p70, %p71
      %s74 = sadd.s32 %s73, 1
      %p77 = scmp.eq.s32.totalorder %s14, 31
      %p78 = scmp.ne.s32.totalorder %s73, %s75
      %p79 = scmp.eq.s32.totalorder %s14, 0
      %p80 = por %p78, %p79
      %p81 = scmp.ne.s32.totalorder %s73, %s75
      %p82 = scmp.eq.s32.totalorder %s19, 31
      %p83 = por %p81, %p82
      %p84 = scmp.ne.s32.totalorder %s75, %s76
      %p85 = scmp.eq.s32.totalorder %s19, 0
      %p86 = por %p84, %p85
      %p87 = scmp.ne.s32.totalorder %s75, %s76
      %p88 = scmp.eq.s32.totalorder %s20, 31
      %p89 = por %p87, %p88
      %p91 = scmp.ne.s32.totalorder %s76, %s90
      %p92 = scmp.eq.s32.totalorder %s20, 0
      %p93 = por %p91, %p92
      %s95 = sadd.s32 %s94, 1
      %p98 = scmp.eq.s32.totalorder %s14, 31
      %p99 = scmp.ne.s32.totalorder %s94, %s96
      %p100 = scmp.eq.s32.totalorder %s14, 0
      %p101 = por %p99, %p100
      %p102 = scmp.ne.s32.totalorder %s94, %s96
      %p103 = scmp.eq.s32.totalorder %s19, 31
      %p104 = por %p102, %p103
      %p105 = scmp.ne.s32.totalorder %s96, %s97
      %p106 = scmp.eq.s32.totalorder %s19, 0
      %p107 = por %p105, %p106
      %p108 = scmp.ne.s32.totalorder %s96, %s97
      %p109 = scmp.eq.s32.totalorder %s20, 31
      %p110 = por %p108, %p109
      %p112 = scmp.ne.s32.totalorder %s97, %s111
      %p113 = scmp.eq.s32.totalorder %s20, 0
      %p114 = por %p112, %p113
      %s115 = ssub.s32 %s21, %s40
      %s116 = ssub.s32 %s22, %s36
      %s117 = sor.u32 %s115, %s116
      %p118 = scmp.eq.s32.totalorder %s117, 0
      %s120 = sadd.s32 %s119, 1
      %s121 = scalar_select %p118, %s119, %s120
      %p124 = pneg %p118
      %p125 = scmp.eq.s32.totalorder %s14, 31
      %p126 = por %p124, %p125
      %p127 = scmp.ne.s32.totalorder %s119, %s122
      %p128 = scmp.eq.s32.totalorder %s14, 0
      %p129 = por %p127, %p128
      %p130 = scmp.ne.s32.totalorder %s119, %s122
      %p131 = scmp.eq.s32.totalorder %s19, 31
      %p132 = por %p130, %p131
      %p133 = scmp.ne.s32.totalorder %s122, %s123
      %p134 = scmp.eq.s32.totalorder %s19, 0
      %p135 = por %p133, %p134
      %p136 = scmp.ne.s32.totalorder %s122, %s123
      %p137 = scmp.eq.s32.totalorder %s20, 31
      %p138 = por %p136, %p137
      %p140 = scmp.ne.s32.totalorder %s123, %s139
      %p141 = scmp.eq.s32.totalorder %s20, 0
      %p142 = por %p140, %p141
      %s143 = ssub.s32 %s21, %s40
      %s144 = ssub.s32 %s22, %s36
      %s145 = sor.u32 %s143, %s144
      %p146 = scmp.eq.s32.totalorder %s145, 0
      %s148 = sadd.s32 %s147, 1
      %s149 = scalar_select %p146, %s147, %s148
      %p152 = pneg %p146
      %p153 = scmp.eq.s32.totalorder %s14, 31
      %p154 = por %p152, %p153
      %p155 = scmp.ne.s32.totalorder %s147, %s150
      %p156 = scmp.eq.s32.totalorder %s14, 0
      %p157 = por %p155, %p156
      %p158 = scmp.ne.s32.totalorder %s147, %s150
      %p159 = scmp.eq.s32.totalorder %s19, 31
      %p160 = por %p158, %p159
      %p161 = scmp.ne.s32.totalorder %s150, %s151
      %p162 = scmp.eq.s32.totalorder %s19, 0
      %p163 = por %p161, %p162
      %p164 = scmp.ne.s32.totalorder %s150, %s151
      %p165 = scmp.eq.s32.totalorder %s20, 31
      %p166 = por %p164, %p165
      %p168 = scmp.ne.s32.totalorder %s151, %s167
      %p169 = scmp.eq.s32.totalorder %s20, 0
      %p170 = por %p168, %p169
      %p171 = scmp.le.s32.totalorder 1, %s14
      %p172 = scmp.lt.s32.totalorder %s14, 33
      %p173 = pnand %p171, %p172
      %p174 = pneg %p173
      // Predicated region
      $region9: #{tpu_custom_call.1} parent=5 // pred_check
        _
      $region10: #{tpu_custom_call.1} parent=5 // pred_check_branch
        %176 = sbr.rel (%p173) target = $region12
      $region11: #{tpu_custom_call.1} parent=5 // pred_region
        %s177 = ssub.s32 %s14, 1
        // Predicated region
        $region13: #{tpu_custom_call.1} parent=11 // pred_check
          %p178 = pneg %p86
        $region14: #{tpu_custom_call.1} parent=11 // pred_check_branch
          %180 = sbr.rel (%p178) target = $region16
        $region15: #{tpu_custom_call.1} parent=11 // pred_region
          _
        $region16: #{tpu_custom_call.1} parent=11 // pred_fallthru
          _
        // Predicated region
        $region17: #{tpu_custom_call.1} parent=11 // pred_check
          %p181 = pneg %p107
        $region18: #{tpu_custom_call.1} parent=11 // pred_check_branch
          %183 = sbr.rel (%p181) target = $region20
        $region19: #{tpu_custom_call.1} parent=11 // pred_region
          _
        $region20: #{tpu_custom_call.1} parent=11 // pred_fallthru
          _
      $region12: #{tpu_custom_call.1} parent=5 // pred_fallthru
        _
      %p184 = scmp.lt.s32.totalorder %s14, 32
      // Predicated region
      $region21: #{tpu_custom_call.1} parent=5 // pred_check
        %p185 = pneg %p184
      $region22: #{tpu_custom_call.1} parent=5 // pred_check_branch
        %187 = sbr.rel (%p185) target = $region24
      $region23: #{tpu_custom_call.1} parent=5 // pred_region
        // Predicated region
        $region25: #{tpu_custom_call.1} parent=23 // pred_check
          %p188 = pneg %p59
        $region26: #{tpu_custom_call.1} parent=23 // pred_check_branch
          %190 = sbr.rel (%p188) target = $region28
        $region27: #{tpu_custom_call.1} parent=23 // pred_region
          %s191 = smul.u32 %s22, 2
          %s192 = sadd.s32 %s191, %s23
          %p193 = scmp.lt.s32.totalorder %s21, 1
          %s194 = scalar_select %p193, %s21, 1
          %p195 = scmp.lt.s32.totalorder %s192, 9
          %s196 = scalar_select %p195, %s192, 9
          %s197 = smul.addr %s196, 14
          %s198 = smul.addr %s194, 140
          %s199 = sadd.s32 %s197, %s198
          %s200 = smul.addr %s199, 8
          %s201 = scalar_lea.vmem %s0, %s200
          %s202 = smul.u32 %s22, 2
          %s203 = sadd.s32 %s202, %s23
        $region28: #{tpu_custom_call.1} parent=23 // pred_fallthru
          _
      $region24: #{tpu_custom_call.1} parent=5 // pred_fallthru
        _
      %p204 = scmp.le.s32.totalorder 1, %s14
      %p205 = scmp.lt.s32.totalorder %s14, 33
      %p206 = pnand %p204, %p205
      %p207 = pneg %p206
      // Predicated region
      $region29: #{tpu_custom_call.1} parent=5 // pred_check
        _
      $region30: #{tpu_custom_call.1} parent=5 // pred_check_branch
        %209 = sbr.rel (%p206) target = $region32
      $region31: #{tpu_custom_call.1} parent=5 // pred_region
        %s210 = ssub.s32 %s14, 1
        %s211 = smul.u32 %s25, 2
        %s212 = sadd.s32 %s211, %s26
        %p213 = scmp.lt.s32.totalorder %s24, 1
        %s214 = scalar_select %p213, %s24, 1
        %p215 = scmp.lt.s32.totalorder %s212, 9
        %s216 = scalar_select %p215, %s212, 9
        %s217 = smul.addr %s216, 14
        %s218 = smul.addr %s214, 140
        %s219 = sadd.s32 %s217, %s218
        %s220 = smul.addr %s219, 8
        %s221 = scalar_lea.vmem %s0, %s220
        %p222 = pneg %p65
        %p223 = pneg %p62
        %p224 = pneg %p86
        %p225 = pneg %p83
        %p226 = pneg %p107
        %p227 = pneg %p104
        %p228 = pneg %p135
        %p229 = pneg %p132
        %p230 = scmp.lt.s32.totalorder %s24, 1
        %s231 = scalar_select %p230, %s24, 1
        %p232 = scmp.lt.s32.totalorder %s25, 3
        %s233 = scalar_select %p232, %s25, 3
        %s234 = smul.addr %s233, 2
        %s235 = smul.addr %s231, 8
        %s236 = sadd.s32 %s234, %s235
        %s237 = smul.addr %s236, 8
        %s238 = scalar_lea.vmem %s3, %s237
        %p239 = pneg %p163
        %p240 = pneg %p160
        %s241 = sand.u32 %s150, 1
        %s242 = scalar_lea.sflag [#allocation5], %s241
        %s243 = sand.u32 %s150, 1
        %s244 = smul.addr %s243, 2
        %s245 = scalar_lea.vmem [#allocation4], %s244
        %s246 = smul.u32 %s25, 2
        %s247 = sadd.s32 %s246, %s26
        %p248 = scmp.lt.s32.totalorder %s24, 1
        %s249 = scalar_select %p248, %s24, 1
        %p250 = scmp.lt.s32.totalorder %s247, 9
        %s251 = scalar_select %p250, %s247, 9
        %s252 = smul.addr %s251, 14
        %s253 = smul.addr %s249, 140
        %s254 = sadd.s32 %s252, %s253
        %s255 = smul.addr %s254, 8
        %s256 = scalar_lea.vmem %s0, %s255
        %s257 = smul.u32 %s25, 2
        %s258 = sadd.s32 %s257, %s26
        %p259 = scmp.lt.s32.totalorder %s24, 1
        %s260 = scalar_select %p259, %s24, 1
        %p261 = scmp.lt.s32.totalorder %s25, 3
        %s262 = scalar_select %p261, %s25, 3
        %s263 = smul.addr %s262, 2
        %s264 = smul.addr %s260, 8
        %s265 = sadd.s32 %s263, %s264
        %s266 = smul.addr %s265, 8
        %s267 = scalar_lea.vmem %s3, %s266
        %v268 = vld [vmem:[%s256] sm:$0xff]
        %v269 = vld [vmem:[%s256 + $0x8] sm:$0xff]
        %v270 = vld [vmem:[%s256 + $0x10] sm:$0xff]
        %v271 = vld [vmem:[%s256 + $0x18] sm:$0xff]
        %v272 = vld [vmem:[%s256 + $0x20] sm:$0xff]
        %v273 = vld [vmem:[%s256 + $0x28] sm:$0xff]
        %v274 = vld [vmem:[%s256 + $0x30] sm:$0xff]
        %v275 = vld [vmem:[%s256 + $0x38] sm:$0xff]
        %v276 = vld [vmem:[%s256 + $0x40] sm:$0xff]
        %v277 = vld [vmem:[%s256 + $0x48] sm:$0xff]
        %v278 = vld [vmem:[%s256 + $0x1] sm:$0xff]
        %v279 = vld [vmem:[%s256 + $0x9] sm:$0xff]
        %v280 = vld [vmem:[%s256 + $0x11] sm:$0xff]
        %v281 = vld [vmem:[%s256 + $0x19] sm:$0xff]
        %v282 = vld [vmem:[%s256 + $0x21] sm:$0xff]
        %v283 = vld [vmem:[%s256 + $0x29] sm:$0xff]
        %v284 = vld [vmem:[%s256 + $0x31] sm:$0xff]
        %v285 = vld [vmem:[%s256 + $0x39] sm:$0xff]
        %v286 = vld [vmem:[%s256 + $0x41] sm:$0xff]
        %v287 = vld [vmem:[%s256 + $0x49] sm:$0xff]
        %v288 = vld [vmem:[%s256 + $0x2] sm:$0xff]
        %v289 = vld [vmem:[%s256 + $0xa] sm:$0xff]
        %v290 = vld [vmem:[%s256 + $0x12] sm:$0xff]
        %v291 = vld [vmem:[%s256 + $0x1a] sm:$0xff]
        %v292 = vld [vmem:[%s256 + $0x22] sm:$0xff]
        %v293 = vld [vmem:[%s256 + $0x2a] sm:$0xff]
        %v294 = vld [vmem:[%s256 + $0x32] sm:$0xff]
        %v295 = vld [vmem:[%s256 + $0x3a] sm:$0xff]
        %v296 = vld [vmem:[%s256 + $0x42] sm:$0xff]
        %v297 = vld [vmem:[%s256 + $0x4a] sm:$0xff]
        %v298 = vld [vmem:[%s256 + $0x52] sm:$0xff]
        %v299 = vld [vmem:[%s256 + $0xb] sm:$0xff]
        %v300 = vld [vmem:[%s256 + $0x13] sm:$0xff]
        %v301 = vld [vmem:[%s256 + $0x1b] sm:$0xff]
        %v302 = vld [vmem:[%s256 + $0x23] sm:$0xff]
        %v303 = vld [vmem:[%s256 + $0x2b] sm:$0xff]
        %v304 = vld [vmem:[%s256 + $0x33] sm:$0xff]
        %v305 = vld [vmem:[%s256 + $0x3b] sm:$0xff]
        %v306 = vld [vmem:[%s256 + $0x43] sm:$0xff]
        %v307 = vld [vmem:[%s256 + $0x4b] sm:$0xff]
        %v308 = vld [vmem:[%s256 + $0x53] sm:$0xff]
        %v309 = vld [vmem:[%s256 + $0xc] sm:$0xff]
        %v310 = vld [vmem:[%s256 + $0x14] sm:$0xff]
        %v311 = vld [vmem:[%s256 + $0x1c] sm:$0xff]
        %v312 = vld [vmem:[%s256 + $0x24] sm:$0xff]
        %v313 = vld [vmem:[%s256 + $0x2c] sm:$0xff]
        %v314 = vld [vmem:[%s256 + $0x34] sm:$0xff]
        %v315 = vld [vmem:[%s256 + $0x3c] sm:$0xff]
        %v316 = vld [vmem:[%s256 + $0x44] sm:$0xff]
        %v317 = vld [vmem:[%s256 + $0x4c] sm:$0xff]
        %v318 = vld [vmem:[%s256 + $0x54] sm:$0xff]
        %v319 = vld [vmem:[%s256 + $0x5c] sm:$0xff]
        %v320 = vld [vmem:[%s256 + $0x15] sm:$0xff]
        %v321 = vld [vmem:[%s256 + $0x1d] sm:$0xff]
        %v322 = vld [vmem:[%s256 + $0x25] sm:$0xff]
        %v323 = vld [vmem:[%s256 + $0x2d] sm:$0xff]
        %v324 = vld [vmem:[%s256 + $0x35] sm:$0xff]
        %v325 = vld [vmem:[%s256 + $0x3d] sm:$0xff]
        %v326 = vld [vmem:[%s256 + $0x45] sm:$0xff]
        %v327 = vld [vmem:[%s256 + $0x4d] sm:$0xff]
        %v328 = vld [vmem:[%s256 + $0x55] sm:$0xff]
        %v329 = vld [vmem:[%s256 + $0x5d] sm:$0xff]
        %v330 = vld [vmem:[%s256 + $0x16] sm:$0xff]
        %v331 = vld [vmem:[%s256 + $0x1e] sm:$0xff]
        %v332 = vld [vmem:[%s256 + $0x26] sm:$0xff]
        %v333 = vld [vmem:[%s256 + $0x2e] sm:$0xff]
        %v334 = vld [vmem:[%s256 + $0x36] sm:$0xff]
        %v335 = vld [vmem:[%s256 + $0x3e] sm:$0xff]
        %v336 = vld [vmem:[%s256 + $0x46] sm:$0xff]
        %v337 = vld [vmem:[%s256 + $0x4e] sm:$0xff]
        %v338 = vld [vmem:[%s256 + $0x56] sm:$0xff]
        %v339 = vld [vmem:[%s256 + $0x5e] sm:$0xff]
        %350 = vrot.lane.b32.xlu0 %v278, 8
        %v351 = vpop.permute.xlu0 %350
        %352 = vrot.lane.b32.xlu0 %v279, 8
        %v353 = vpop.permute.xlu0 %352
        %354 = vrot.lane.b32.xlu0 %v280, 8
        %v355 = vpop.permute.xlu0 %354
        %356 = vrot.lane.b32.xlu0 %v281, 8
        %v357 = vpop.permute.xlu0 %356
        %358 = vrot.lane.b32.xlu0 %v282, 8
        %v359 = vpop.permute.xlu0 %358
        %360 = vrot.lane.b32.xlu0 %v283, 8
        %v361 = vpop.permute.xlu0 %360
        %362 = vrot.lane.b32.xlu0 %v284, 8
        %v363 = vpop.permute.xlu0 %362
        %364 = vrot.lane.b32.xlu0 %v285, 8
        %v365 = vpop.permute.xlu0 %364
        %366 = vrot.lane.b32.xlu0 %v286, 8
        %v367 = vpop.permute.xlu0 %366
        %368 = vrot.lane.b32.xlu0 %v287, 8
        %v369 = vpop.permute.xlu0 %368
        %390 = vrot.lane.b32.xlu0 %v288, 16
        %v391 = vpop.permute.xlu0 %390
        %392 = vrot.lane.b32.xlu0 %v289, 16
        %v393 = vpop.permute.xlu0 %392
        %394 = vrot.lane.b32.xlu0 %v290, 16
        %v395 = vpop.permute.xlu0 %394
        %396 = vrot.lane.b32.xlu0 %v291, 16
        %v397 = vpop.permute.xlu0 %396
        %398 = vrot.lane.b32.xlu0 %v292, 16
        %v399 = vpop.permute.xlu0 %398
        %400 = vrot.lane.b32.xlu0 %v293, 16
        %v401 = vpop.permute.xlu0 %400
        %402 = vrot.lane.b32.xlu0 %v294, 16
        %v403 = vpop.permute.xlu0 %402
        %404 = vrot.lane.b32.xlu0 %v295, 16
        %v405 = vpop.permute.xlu0 %404
        %406 = vrot.lane.b32.xlu0 %v296, 16
        %v407 = vpop.permute.xlu0 %406
        %408 = vrot.lane.b32.xlu0 %v297, 16
        %v409 = vpop.permute.xlu0 %408
        %421 = vrot.lane.b32.xlu0 %v289, 24
        %v422 = vpop.permute.xlu0 %421
        %423 = vrot.lane.b32.xlu0 %v290, 24
        %v424 = vpop.permute.xlu0 %423
        %425 = vrot.lane.b32.xlu0 %v291, 24
        %v426 = vpop.permute.xlu0 %425
        %427 = vrot.lane.b32.xlu0 %v292, 24
        %v428 = vpop.permute.xlu0 %427
        %429 = vrot.lane.b32.xlu0 %v293, 24
        %v430 = vpop.permute.xlu0 %429
        %431 = vrot.lane.b32.xlu0 %v294, 24
        %v432 = vpop.permute.xlu0 %431
        %433 = vrot.lane.b32.xlu0 %v295, 24
        %v434 = vpop.permute.xlu0 %433
        %435 = vrot.lane.b32.xlu0 %v296, 24
        %v436 = vpop.permute.xlu0 %435
        %437 = vrot.lane.b32.xlu0 %v297, 24
        %v438 = vpop.permute.xlu0 %437
        %439 = vrot.lane.b32.xlu0 %v298, 24
        %v440 = vpop.permute.xlu0 %439
        %461 = vrot.lane.b32.xlu0 %v299, 32
        %v462 = vpop.permute.xlu0 %461
        %463 = vrot.lane.b32.xlu0 %v300, 32
        %v464 = vpop.permute.xlu0 %463
        %465 = vrot.lane.b32.xlu0 %v301, 32
        %v466 = vpop.permute.xlu0 %465
        %467 = vrot.lane.b32.xlu0 %v302, 32
        %v468 = vpop.permute.xlu0 %467
        %469 = vrot.lane.b32.xlu0 %v303, 32
        %v470 = vpop.permute.xlu0 %469
        %471 = vrot.lane.b32.xlu0 %v304, 32
        %v472 = vpop.permute.xlu0 %471
        %473 = vrot.lane.b32.xlu0 %v305, 32
        %v474 = vpop.permute.xlu0 %473
        %475 = vrot.lane.b32.xlu0 %v306, 32
        %v476 = vpop.permute.xlu0 %475
        %477 = vrot.lane.b32.xlu0 %v307, 32
        %v478 = vpop.permute.xlu0 %477
        %479 = vrot.lane.b32.xlu0 %v308, 32
        %v480 = vpop.permute.xlu0 %479
        %501 = vrot.lane.b32.xlu0 %v309, 40
        %v502 = vpop.permute.xlu0 %501
        %503 = vrot.lane.b32.xlu0 %v310, 40
        %v504 = vpop.permute.xlu0 %503
        %505 = vrot.lane.b32.xlu0 %v311, 40
        %v506 = vpop.permute.xlu0 %505
        %507 = vrot.lane.b32.xlu0 %v312, 40
        %v508 = vpop.permute.xlu0 %507
        %509 = vrot.lane.b32.xlu0 %v313, 40
        %v510 = vpop.permute.xlu0 %509
        %511 = vrot.lane.b32.xlu0 %v314, 40
        %v512 = vpop.permute.xlu0 %511
        %513 = vrot.lane.b32.xlu0 %v315, 40
        %v514 = vpop.permute.xlu0 %513
        %515 = vrot.lane.b32.xlu0 %v316, 40
        %v516 = vpop.permute.xlu0 %515
        %517 = vrot.lane.b32.xlu0 %v317, 40
        %v518 = vpop.permute.xlu0 %517
        %519 = vrot.lane.b32.xlu0 %v318, 40
        %v520 = vpop.permute.xlu0 %519
        %532 = vrot.lane.b32.xlu0 %v310, 48
        %v533 = vpop.permute.xlu0 %532
        %534 = vrot.lane.b32.xlu0 %v311, 48
        %v535 = vpop.permute.xlu0 %534
        %536 = vrot.lane.b32.xlu0 %v312, 48
        %v537 = vpop.permute.xlu0 %536
        %538 = vrot.lane.b32.xlu0 %v313, 48
        %v539 = vpop.permute.xlu0 %538
        %540 = vrot.lane.b32.xlu0 %v314, 48
        %v541 = vpop.permute.xlu0 %540
        %542 = vrot.lane.b32.xlu0 %v315, 48
        %v543 = vpop.permute.xlu0 %542
        %544 = vrot.lane.b32.xlu0 %v316, 48
        %v545 = vpop.permute.xlu0 %544
        %546 = vrot.lane.b32.xlu0 %v317, 48
        %v547 = vpop.permute.xlu0 %546
        %548 = vrot.lane.b32.xlu0 %v318, 48
        %v549 = vpop.permute.xlu0 %548
        %550 = vrot.lane.b32.xlu0 %v319, 48
        %v551 = vpop.permute.xlu0 %550
        %572 = vrot.lane.b32.xlu0 %v320, 56
        %v573 = vpop.permute.xlu0 %572
        %574 = vrot.lane.b32.xlu0 %v321, 56
        %v575 = vpop.permute.xlu0 %574
        %576 = vrot.lane.b32.xlu0 %v322, 56
        %v577 = vpop.permute.xlu0 %576
        %578 = vrot.lane.b32.xlu0 %v323, 56
        %v579 = vpop.permute.xlu0 %578
        %580 = vrot.lane.b32.xlu0 %v324, 56
        %v581 = vpop.permute.xlu0 %580
        %582 = vrot.lane.b32.xlu0 %v325, 56
        %v583 = vpop.permute.xlu0 %582
        %584 = vrot.lane.b32.xlu0 %v326, 56
        %v585 = vpop.permute.xlu0 %584
        %586 = vrot.lane.b32.xlu0 %v327, 56
        %v587 = vpop.permute.xlu0 %586
        %588 = vrot.lane.b32.xlu0 %v328, 56
        %v589 = vpop.permute.xlu0 %588
        %590 = vrot.lane.b32.xlu0 %v329, 56
        %v591 = vpop.permute.xlu0 %590
        %612 = vrot.lane.b32.xlu0 %v330, 64
        %v613 = vpop.permute.xlu0 %612
        %614 = vrot.lane.b32.xlu0 %v331, 64
        %v615 = vpop.permute.xlu0 %614
        %616 = vrot.lane.b32.xlu0 %v332, 64
        %v617 = vpop.permute.xlu0 %616
        %618 = vrot.lane.b32.xlu0 %v333, 64
        %v619 = vpop.permute.xlu0 %618
        %620 = vrot.lane.b32.xlu0 %v334, 64
        %v621 = vpop.permute.xlu0 %620
        %622 = vrot.lane.b32.xlu0 %v335, 64
        %v623 = vpop.permute.xlu0 %622
        %624 = vrot.lane.b32.xlu0 %v336, 64
        %v625 = vpop.permute.xlu0 %624
        %626 = vrot.lane.b32.xlu0 %v337, 64
        %v627 = vpop.permute.xlu0 %626
        %628 = vrot.lane.b32.xlu0 %v338, 64
        %v629 = vpop.permute.xlu0 %628
        %630 = vrot.lane.b32.xlu0 %v339, 64
        %v631 = vpop.permute.xlu0 %630
        %vm642 = vcmask 64512
        %v643 = vsel %vm642, %v268, %v351
        %v644 = vsel %vm642, %v269, %v353
        %v645 = vsel %vm642, %v270, %v355
        %v646 = vsel %vm642, %v271, %v357
        %v647 = vsel %vm642, %v272, %v359
        %v648 = vsel %vm642, %v273, %v361
        %v649 = vsel %vm642, %v274, %v363
        %v650 = vsel %vm642, %v275, %v365
        %v651 = vsel %vm642, %v276, %v367
        %v652 = vsel %vm642, %v277, %v369
        %vm653 = vcmask 130048
        %v654 = vsel %vm653, %v643, %v391
        %v655 = vsel %vm653, %v644, %v393
        %v656 = vsel %vm653, %v645, %v395
        %v657 = vsel %vm653, %v646, %v397
        %v658 = vsel %vm653, %v647, %v399
        %v659 = vsel %vm653, %v648, %v401
        %v660 = vsel %vm653, %v649, %v403
        %v661 = vsel %vm653, %v650, %v405
        %v662 = vsel %vm653, %v651, %v407
        %v663 = vsel %vm653, %v652, %v409
        %vm664 = vcmask 195584
        %v665 = vsel %vm664, %v654, %v422
        %v666 = vsel %vm664, %v655, %v424
        %v667 = vsel %vm664, %v656, %v426
        %v668 = vsel %vm664, %v657, %v428
        %v669 = vsel %vm664, %v658, %v430
        %v670 = vsel %vm664, %v659, %v432
        %v671 = vsel %vm664, %v660, %v434
        %v672 = vsel %vm664, %v661, %v436
        %v673 = vsel %vm664, %v662, %v438
        %v674 = vsel %vm664, %v663, %v440
        %vm675 = vcmask 261120
        %v676 = vsel %vm675, %v665, %v462
        %v677 = vsel %vm675, %v666, %v464
        %v678 = vsel %vm675, %v667, %v466
        %v679 = vsel %vm675, %v668, %v468
        %v680 = vsel %vm675, %v669, %v470
        %v681 = vsel %vm675, %v670, %v472
        %v682 = vsel %vm675, %v671, %v474
        %v683 = vsel %vm675, %v672, %v476
        %v684 = vsel %vm675, %v673, %v478
        %v685 = vsel %vm675, %v674, %v480
        %vm686 = vcmask 326656
        %v687 = vsel %vm686, %v676, %v502
        %v688 = vsel %vm686, %v677, %v504
        %v689 = vsel %vm686, %v678, %v506
        %v690 = vsel %vm686, %v679, %v508
        %v691 = vsel %vm686, %v680, %v510
        %v692 = vsel %vm686, %v681, %v512
        %v693 = vsel %vm686, %v682, %v514
        %v694 = vsel %vm686, %v683, %v516
        %v695 = vsel %vm686, %v684, %v518
        %v696 = vsel %vm686, %v685, %v520
        %vm697 = vcmask 392192
        %v698 = vsel %vm697, %v687, %v533
        %v699 = vsel %vm697, %v688, %v535
        %v700 = vsel %vm697, %v689, %v537
        %v701 = vsel %vm697, %v690, %v539
        %v702 = vsel %vm697, %v691, %v541
        %v703 = vsel %vm697, %v692, %v543
        %v704 = vsel %vm697, %v693, %v545
        %v705 = vsel %vm697, %v694, %v547
        %v706 = vsel %vm697, %v695, %v549
        %v707 = vsel %vm697, %v696, %v551
        %vm708 = vcmask 457728
        %v709 = vsel %vm708, %v698, %v573
        %v710 = vsel %vm708, %v699, %v575
        %v711 = vsel %vm708, %v700, %v577
        %v712 = vsel %vm708, %v701, %v579
        %v713 = vsel %vm708, %v702, %v581
        %v714 = vsel %vm708, %v703, %v583
        %v715 = vsel %vm708, %v704, %v585
        %v716 = vsel %vm708, %v705, %v587
        %v717 = vsel %vm708, %v706, %v589
        %v718 = vsel %vm708, %v707, %v591
        %vm719 = vcmask 523264
        %v720 = vsel %vm719, %v709, %v613
        %v721 = vsel %vm719, %v710, %v615
        %v722 = vsel %vm719, %v711, %v617
        %v723 = vsel %vm719, %v712, %v619
        %v724 = vsel %vm719, %v713, %v621
        %v725 = vsel %vm719, %v714, %v623
        %v726 = vsel %vm719, %v715, %v625
        %v727 = vsel %vm719, %v716, %v627
        %v728 = vsel %vm719, %v717, %v629
        %v729 = vsel %vm719, %v718, %v631
        %p730 = scmp.eq.s32.totalorder %s26, 0
        // Predicated region
        $region33: #{tpu_custom_call.1} parent=31 // pred_check
          %p731 = pneg %p730
        $region34: #{tpu_custom_call.1} parent=31 // pred_check_branch
          %733 = sbr.rel (%p731) target = $region36
        $region35: #{tpu_custom_call.1} parent=31 // pred_region
          %v734 = vld [vmem:[%s1] sm:$0xff]
          %v735 = vld [vmem:[%s1 + $0x8] sm:$0xff]
          %v736 = vld [vmem:[%s1 + $0x10] sm:$0xff]
          %v737 = vld [vmem:[%s1 + $0x18] sm:$0xff]
          %v738 = vld [vmem:[%s1 + $0x20] sm:$0xff]
          %v739 = vld [vmem:[%s1 + $0x28] sm:$0xff]
          %v740 = vld [vmem:[%s1 + $0x30] sm:$0xff]
          %v741 = vld [vmem:[%s1 + $0x38] sm:$0xff]
          %v742 = vld [vmem:[%s1 + $0x40] sm:$0xff]
          %vm743 = vcmask 588800
          %v745 = vsel %vm743, %v720, 0
          %v748 = vsel %vm743, %v721, 0
          %v751 = vsel %vm743, %v722, 0
          %v754 = vsel %vm743, %v723, 0
          %v757 = vsel %vm743, %v724, 0
          %v760 = vsel %vm743, %v725, 0
          %v763 = vsel %vm743, %v726, 0
          %v766 = vsel %vm743, %v727, 0
          %v769 = vsel %vm743, %v728, 0
          %v772 = vsel %vm743, %v729, 0
          %774 = vmatprep.subr.mxu0 0.0
          %775 = vmatpush1.msra.mxu0 %v734
          %776 = vmatprep.subr.mxu0 0.0
          %777 = vmatpush1.msra.mxu0 %v735
          %778 = vmatprep.subr.mxu0 0.0
          %779 = vmatpush1.msra.mxu0 %v736
          %780 = vmatprep.subr.mxu0 0.0
          %781 = vmatpush1.msra.mxu0 %v737
          %782 = vmatprep.subr.mxu0 0.0
          %783 = vmatpush1.msra.mxu0 %v738
          %784 = vmatprep.subr.mxu0 0.0
          %785 = vmatpush1.msra.mxu0 %v739
          %786 = vmatprep.subr.mxu0 0.0
          %787 = vmatpush1.msra.mxu0 %v740
          %788 = vmatprep.subr.mxu0 0.0
          %789 = vmatpush1.msra.mxu0 %v741
          %790 = vmatprep.subr.mxu0 0.0
          %791 = vmatpush1.msra.mxu0 %v742
          %792 = vmatprep.subr.mxu0 0.0
          %793 = vmatpush1.msra.mxu0 0.0
          %794 = vmatprep.subr.mxu0 0.0
          %795 = vmatpush1.msra.mxu0 0.0
          %796 = vmatprep.subr.mxu0 0.0
          %797 = vmatpush1.msra.mxu0 0.0
          %798 = vmatprep.subr.mxu0 0.0
          %799 = vmatpush1.msra.mxu0 0.0
          %800 = vmatprep.subr.mxu0 0.0
          %801 = vmatpush1.msra.mxu0 0.0
          %802 = vmatprep.subr.mxu0 0.0
          %803 = vmatpush1.msra.mxu0 0.0
          %804 = vmatprep.subr.mxu0 0.0
          %805 = vmatpush1.msra.mxu0 0.0
          %806 = vmatprep.subr.mxu0 0.0
          %807 = vmatpush1.msra.mxu0 0.0
          %808 = vmatprep.subr.mxu0 0.0
          %809 = vmatpush1.msra.mxu0 0.0
          %810 = vmatprep.subr.mxu0 0.0
          %811 = vmatpush1.msra.mxu0 0.0
          %812 = vmatprep.subr.mxu0 0.0
          %813 = vmatpush1.msra.mxu0 0.0
          %814 = vmatprep.subr.mxu0 0.0
          %815 = vmatpush1.msra.mxu0 0.0
          %816 = vmatprep.subr.mxu0 0.0
          %817 = vmatpush1.msra.mxu0 0.0
          %818 = vmatprep.subr.mxu0 0.0
          %819 = vmatpush1.msra.mxu0 0.0
          %820 = vmatprep.subr.mxu0 0.0
          %821 = vmatpush1.msra.mxu0 0.0
          %822 = vmatprep.subr.mxu0 0.0
          %823 = vmatpush1.msra.mxu0 0.0
          %824 = vmatprep.subr.mxu0 0.0
          %825 = vmatpush1.msra.mxu0 0.0
          %826 = vmatprep.subr.mxu0 0.0
          %827 = vmatpush1.msra.mxu0 0.0
          %828 = vmatprep.subr.mxu0 0.0
          %829 = vmatpush1.msra.mxu0 0.0
          %830 = vmatprep.subr.mxu0 0.0
          %831 = vmatpush1.msra.mxu0 0.0
          %832 = vmatprep.subr.mxu0 0.0
          %833 = vmatpush1.msra.mxu0 0.0
          %834 = vmatprep.subr.mxu0 0.0
          %835 = vmatpush1.msra.mxu0 0.0
          %836 = vmatprep.subr.mxu0 0.0
          %837 = vmatpush1.msra.mxu0 0.0
          %838 = vmatprep.mubr.f32.mxu0 0.0
          %839 = vmatmul.mubr.f32.gmra.mrb[0].mxu0 %v745
          %v840 = vpop.f32.mrb[0].mxu0
          %v841 = vadd.f32 0.0, %v840
          %v842 = vpop.f32.mrb[0].mxu0
          %843 = vmatprep.mubr.f32.mxu0 0.0
          %844 = vmatmul.mubr.f32.gmra.mrb[0].mxu0 %v748
          %v845 = vpop.f32.mrb[0].mxu0
          %v846 = vadd.f32 0.0, %v845
          %v847 = vpop.f32.mrb[0].mxu0
          %848 = vmatprep.mubr.f32.mxu0 0.0
          %849 = vmatmul.mubr.f32.gmra.mrb[0].mxu0 %v751
          %v850 = vpop.f32.mrb[0].mxu0
          %v851 = vadd.f32 0.0, %v850
          %v852 = vpop.f32.mrb[0].mxu0
          %853 = vmatprep.mubr.f32.mxu0 0.0
          %854 = vmatmul.mubr.f32.gmra.mrb[0].mxu0 %v754
          %v855 = vpop.f32.mrb[0].mxu0
          %v856 = vadd.f32 0.0, %v855
          %v857 = vpop.f32.mrb[0].mxu0
          %858 = vmatprep.mubr.f32.mxu0 0.0
          %859 = vmatmul.mubr.f32.gmra.mrb[0].mxu0 %v757
          %v860 = vpop.f32.mrb[0].mxu0
          %v861 = vadd.f32 0.0, %v860
          %v862 = vpop.f32.mrb[0].mxu0
          %863 = vmatprep.mubr.f32.mxu0 0.0
          %864 = vmatmul.mubr.f32.gmra.mrb[0].mxu0 %v760
          %v865 = vpop.f32.mrb[0].mxu0
          %v866 = vadd.f32 0.0, %v865
          %v867 = vpop.f32.mrb[0].mxu0
          %868 = vmatprep.mubr.f32.mxu0 0.0
          %869 = vmatmul.mubr.f32.gmra.mrb[0].mxu0 %v763
          %v870 = vpop.f32.mrb[0].mxu0
          %v871 = vadd.f32 0.0, %v870
          %v872 = vpop.f32.mrb[0].mxu0
          %873 = vmatprep.mubr.f32.mxu0 0.0
          %874 = vmatmul.mubr.f32.gmra.mrb[0].mxu0 %v766
          %v875 = vpop.f32.mrb[0].mxu0
          %v876 = vadd.f32 0.0, %v875
          %v877 = vpop.f32.mrb[0].mxu0
          %878 = vmatprep.mubr.f32.mxu0 0.0
          %879 = vmatmul.mubr.f32.gmra.mrb[0].mxu0 %v769
          %v880 = vpop.f32.mrb[0].mxu0
          %v881 = vadd.f32 0.0, %v880
          %v882 = vpop.f32.mrb[0].mxu0
          %883 = vmatprep.mubr.f32.mxu0 0.0
          %884 = vmatmul.mubr.f32.gmra.mrb[0].mxu0 %v772
          %v885 = vpop.f32.mrb[0].mxu0
          %v886 = vadd.f32 0.0, %v885
          %v887 = vpop.f32.mrb[0].mxu0
          %888 = vdwg.mxu0
          %889 = vst.msk [vmem:[#allocation2] sm:$0xff] %vm642, %v841
          %890 = vst.msk [vmem:[#allocation2 + $0x8] sm:$0xff] %vm642, %v846
          %891 = vst.msk [vmem:[#allocation2 + $0x10] sm:$0xff] %vm642, %v851
          %892 = vst.msk [vmem:[#allocation2 + $0x18] sm:$0xff] %vm642, %v856
          %893 = vst.msk [vmem:[#allocation2 + $0x20] sm:$0xff] %vm642, %v861
          %894 = vst.msk [vmem:[#allocation2 + $0x28] sm:$0xff] %vm642, %v866
          %895 = vst.msk [vmem:[#allocation2 + $0x30] sm:$0xff] %vm642, %v871
          %896 = vst.msk [vmem:[#allocation2 + $0x38] sm:$0xff] %vm642, %v876
          %897 = vst.msk [vmem:[#allocation2 + $0x40] sm:$0xff] %vm642, %v881
          %898 = vst.msk [vmem:[#allocation2 + $0x48] sm:$0xff] %vm642, %v886
        $region36: #{tpu_custom_call.1} parent=31 // pred_fallthru
          _
        %p899 = scmp.eq.s32.totalorder %s26, 1
        // Predicated region
        $region37: #{tpu_custom_call.1} parent=31 // pred_check
          %p900 = pneg %p899
        $region38: #{tpu_custom_call.1} parent=31 // pred_check_branch
          %902 = sbr.rel (%p900) target = $region40
        $region39: #{tpu_custom_call.1} parent=31 // pred_region
          %v903 = vld [vmem:[#allocation2] sm:$0xff]
          %v904 = vld [vmem:[#allocation2 + $0x8] sm:$0xff]
          %v905 = vld [vmem:[#allocation2 + $0x10] sm:$0xff]
          %v906 = vld [vmem:[#allocation2 + $0x18] sm:$0xff]
          %v907 = vld [vmem:[#allocation2 + $0x20] sm:$0xff]
          %v908 = vld [vmem:[#allocation2 + $0x28] sm:$0xff]
          %v909 = vld [vmem:[#allocation2 + $0x30] sm:$0xff]
          %v910 = vld [vmem:[#allocation2 + $0x38] sm:$0xff]
          %v911 = vld [vmem:[#allocation2 + $0x40] sm:$0xff]
          %v912 = vld [vmem:[#allocation2 + $0x48] sm:$0xff]
          %s913 = scalar_lea.vmem %s1, 72
          %v914 = vld [vmem:[%s913] sm:$0xff]
          %v915 = vld [vmem:[%s913 + $0x8] sm:$0xff]
          %v916 = vld [vmem:[%s913 + $0x10] sm:$0xff]
          %v917 = vld [vmem:[%s913 + $0x18] sm:$0xff]
          %v918 = vld [vmem:[%s913 + $0x20] sm:$0xff]
          %v919 = vld [vmem:[%s913 + $0x28] sm:$0xff]
          %v920 = vld [vmem:[%s913 + $0x30] sm:$0xff]
          %v921 = vld [vmem:[%s913 + $0x38] sm:$0xff]
          %v922 = vld [vmem:[%s913 + $0x40] sm:$0xff]
          %vm923 = vcmask 588800
          %v925 = vsel %vm923, %v720, 0
          %v928 = vsel %vm923, %v721, 0
          %v931 = vsel %vm923, %v722, 0
          %v934 = vsel %vm923, %v723, 0
          %v937 = vsel %vm923, %v724, 0
          %v940 = vsel %vm923, %v725, 0
          %v943 = vsel %vm923, %v726, 0
          %v946 = vsel %vm923, %v727, 0
          %v949 = vsel %vm923, %v728, 0
          %v952 = vsel %vm923, %v729, 0
          %954 = vmatprep.subr.mxu0 0.0
          %955 = vmatpush1.msra.mxu0 %v914
          %956 = vmatprep.subr.mxu0 0.0
          %957 = vmatpush1.msra.mxu0 %v915
          %958 = vmatprep.subr.mxu0 0.0
          %959 = vmatpush1.msra.mxu0 %v916
          %960 = vmatprep.subr.mxu0 0.0
          %961 = vmatpush1.msra.mxu0 %v917
          %962 = vmatprep.subr.mxu0 0.0
          %963 = vmatpush1.msra.mxu0 %v918
          %964 = vmatprep.subr.mxu0 0.0
          %965 = vmatpush1.msra.mxu0 %v919
          %966 = vmatprep.subr.mxu0 0.0
          %967 = vmatpush1.msra.mxu0 %v920
          %968 = vmatprep.subr.mxu0 0.0
          %969 = vmatpush1.msra.mxu0 %v921
          %970 = vmatprep.subr.mxu0 0.0
          %971 = vmatpush1.msra.mxu0 %v922
          %972 = vmatprep.subr.mxu0 0.0
          %973 = vmatpush1.msra.mxu0 0.0
          %974 = vmatprep.subr.mxu0 0.0
          %975 = vmatpush1.msra.mxu0 0.0
          %976 = vmatprep.subr.mxu0 0.0
          %977 = vmatpush1.msra.mxu0 0.0
          %978 = vmatprep.subr.mxu0 0.0
          %979 = vmatpush1.msra.mxu0 0.0
          %980 = vmatprep.subr.mxu0 0.0
          %981 = vmatpush1.msra.mxu0 0.0
          %982 = vmatprep.subr.mxu0 0.0
          %983 = vmatpush1.msra.mxu0 0.0
          %984 = vmatprep.subr.mxu0 0.0
          %985 = vmatpush1.msra.mxu0 0.0
          %986 = vmatprep.subr.mxu0 0.0
          %987 = vmatpush1.msra.mxu0 0.0
          %988 = vmatprep.subr.mxu0 0.0
          %989 = vmatpush1.msra.mxu0 0.0
          %990 = vmatprep.subr.mxu0 0.0
          %991 = vmatpush1.msra.mxu0 0.0
          %992 = vmatprep.subr.mxu0 0.0
          %993 = vmatpush1.msra.mxu0 0.0
          %994 = vmatprep.subr.mxu0 0.0
          %995 = vmatpush1.msra.mxu0 0.0
          %996 = vmatprep.subr.mxu0 0.0
          %997 = vmatpush1.msra.mxu0 0.0
          %998 = vmatprep.subr.mxu0 0.0
          %999 = vmatpush1.msra.mxu0 0.0
          %1000 = vmatprep.subr.mxu0 0.0
          %1001 = vmatpush1.msra.mxu0 0.0
          %1002 = vmatprep.subr.mxu0 0.0
          %1003 = vmatpush1.msra.mxu0 0.0
          %1004 = vmatprep.subr.mxu0 0.0
          %1005 = vmatpush1.msra.mxu0 0.0
          %1006 = vmatprep.subr.mxu0 0.0
          %1007 = vmatpush1.msra.mxu0 0.0
          %1008 = vmatprep.subr.mxu0 0.0
          %1009 = vmatpush1.msra.mxu0 0.0
          %1010 = vmatprep.subr.mxu0 0.0
          %1011 = vmatpush1.msra.mxu0 0.0
          %1012 = vmatprep.subr.mxu0 0.0
          %1013 = vmatpush1.msra.mxu0 0.0
          %1014 = vmatprep.subr.mxu0 0.0
          %1015 = vmatpush1.msra.mxu0 0.0
          %1016 = vmatprep.subr.mxu0 0.0
          %1017 = vmatpush1.msra.mxu0 0.0
          %1018 = vmatprep.mubr.f32.mxu0 0.0
          %1019 = vmatmul.mubr.f32.gmra.mrb[0].mxu0 %v925
          %v1020 = vpop.f32.mrb[0].mxu0
          %v1021 = vadd.f32 0.0, %v1020
          %v1022 = vpop.f32.mrb[0].mxu0
          %1023 = vmatprep.mubr.f32.mxu0 0.0
          %1024 = vmatmul.mubr.f32.gmra.mrb[0].mxu0 %v928
          %v1025 = vpop.f32.mrb[0].mxu0
          %v1026 = vadd.f32 0.0, %v1025
          %v1027 = vpop.f32.mrb[0].mxu0
          %1028 = vmatprep.mubr.f32.mxu0 0.0
          %1029 = vmatmul.mubr.f32.gmra.mrb[0].mxu0 %v931
          %v1030 = vpop.f32.mrb[0].mxu0
          %v1031 = vadd.f32 0.0, %v1030
          %v1032 = vpop.f32.mrb[0].mxu0
          %1033 = vmatprep.mubr.f32.mxu0 0.0
          %1034 = vmatmul.mubr.f32.gmra.mrb[0].mxu0 %v934
          %v1035 = vpop.f32.mrb[0].mxu0
          %v1036 = vadd.f32 0.0, %v1035
          %v1037 = vpop.f32.mrb[0].mxu0
          %1038 = vmatprep.mubr.f32.mxu0 0.0
          %1039 = vmatmul.mubr.f32.gmra.mrb[0].mxu0 %v937
          %v1040 = vpop.f32.mrb[0].mxu0
          %v1041 = vadd.f32 0.0, %v1040
          %v1042 = vpop.f32.mrb[0].mxu0
          %1043 = vmatprep.mubr.f32.mxu0 0.0
          %1044 = vmatmul.mubr.f32.gmra.mrb[0].mxu0 %v940
          %v1045 = vpop.f32.mrb[0].mxu0
          %v1046 = vadd.f32 0.0, %v1045
          %v1047 = vpop.f32.mrb[0].mxu0
          %1048 = vmatprep.mubr.f32.mxu0 0.0
          %1049 = vmatmul.mubr.f32.gmra.mrb[0].mxu0 %v943
          %v1050 = vpop.f32.mrb[0].mxu0
          %v1051 = vadd.f32 0.0, %v1050
          %v1052 = vpop.f32.mrb[0].mxu0
          %1053 = vmatprep.mubr.f32.mxu0 0.0
          %1054 = vmatmul.mubr.f32.gmra.mrb[0].mxu0 %v946
          %v1055 = vpop.f32.mrb[0].mxu0
          %v1056 = vadd.f32 0.0, %v1055
          %v1057 = vpop.f32.mrb[0].mxu0
          %1058 = vmatprep.mubr.f32.mxu0 0.0
          %1059 = vmatmul.mubr.f32.gmra.mrb[0].mxu0 %v949
          %v1060 = vpop.f32.mrb[0].mxu0
          %v1061 = vadd.f32 0.0, %v1060
          %v1062 = vpop.f32.mrb[0].mxu0
          %1063 = vmatprep.mubr.f32.mxu0 0.0
          %1064 = vmatmul.mubr.f32.gmra.mrb[0].mxu0 %v952
          %v1065 = vpop.f32.mrb[0].mxu0
          %v1066 = vadd.f32 0.0, %v1065
          %v1067 = vpop.f32.mrb[0].mxu0
          %1068 = vdwg.mxu0
          %v1069 = vadd.f32 %v903, %v1021
          %v1070 = vadd.f32 %v904, %v1026
          %v1071 = vadd.f32 %v905, %v1031
          %v1072 = vadd.f32 %v906, %v1036
          %v1073 = vadd.f32 %v907, %v1041
          %v1074 = vadd.f32 %v908, %v1046
          %v1075 = vadd.f32 %v909, %v1051
          %v1076 = vadd.f32 %v910, %v1056
          %v1077 = vadd.f32 %v911, %v1061
          %v1078 = vadd.f32 %v912, %v1066
          %1079 = vst.msk [vmem:[#allocation2] sm:$0xff] %vm642, %v1069
          %1080 = vst.msk [vmem:[#allocation2 + $0x8] sm:$0xff] %vm642, %v1070
          %1081 = vst.msk [vmem:[#allocation2 + $0x10] sm:$0xff] %vm642, %v1071
          %1082 = vst.msk [vmem:[#allocation2 + $0x18] sm:$0xff] %vm642, %v1072
          %1083 = vst.msk [vmem:[#allocation2 + $0x20] sm:$0xff] %vm642, %v1073
          %1084 = vst.msk [vmem:[#allocation2 + $0x28] sm:$0xff] %vm642, %v1074
          %1085 = vst.msk [vmem:[#allocation2 + $0x30] sm:$0xff] %vm642, %v1075
          %1086 = vst.msk [vmem:[#allocation2 + $0x38] sm:$0xff] %vm642, %v1076
          %1087 = vst.msk [vmem:[#allocation2 + $0x40] sm:$0xff] %vm642, %v1077
          %1088 = vst.msk [vmem:[#allocation2 + $0x48] sm:$0xff] %vm642, %v1078
          %v1089 = vld [vmem:[%s1] sm:$0xff]
          %v1090 = vld [vmem:[%s1 + $0x8] sm:$0xff]
          %v1091 = vld [vmem:[%s1 + $0x10] sm:$0xff]
          %v1092 = vld [vmem:[%s1 + $0x18] sm:$0xff]
          %v1093 = vld [vmem:[%s1 + $0x20] sm:$0xff]
          %v1094 = vld [vmem:[%s1 + $0x28] sm:$0xff]
          %v1095 = vld [vmem:[%s1 + $0x30] sm:$0xff]
          %v1096 = vld [vmem:[%s1 + $0x38] sm:$0xff]
          %v1097 = vld [vmem:[%s1 + $0x40] sm:$0xff]
          %1098 = vmatprep.subr.mxu0 0.0
          %1099 = vmatpush1.msra.mxu0 %v1089
          %1100 = vmatprep.subr.mxu0 0.0
          %1101 = vmatpush1.msra.mxu0 %v1090
          %1102 = vmatprep.subr.mxu0 0.0
          %1103 = vmatpush1.msra.mxu0 %v1091
          %1104 = vmatprep.subr.mxu0 0.0
          %1105 = vmatpush1.msra.mxu0 %v1092
          %1106 = vmatprep.subr.mxu0 0.0
          %1107 = vmatpush1.msra.mxu0 %v1093
          %1108 = vmatprep.subr.mxu0 0.0
          %1109 = vmatpush1.msra.mxu0 %v1094
          %1110 = vmatprep.subr.mxu0 0.0
          %1111 = vmatpush1.msra.mxu0 %v1095
          %1112 = vmatprep.subr.mxu0 0.0
          %1113 = vmatpush1.msra.mxu0 %v1096
          %1114 = vmatprep.subr.mxu0 0.0
          %1115 = vmatpush1.msra.mxu0 %v1097
          %1116 = vmatprep.subr.mxu0 0.0
          %1117 = vmatpush1.msra.mxu0 0.0
          %1118 = vmatprep.subr.mxu0 0.0
          %1119 = vmatpush1.msra.mxu0 0.0
          %1120 = vmatprep.subr.mxu0 0.0
          %1121 = vmatpush1.msra.mxu0 0.0
          %1122 = vmatprep.subr.mxu0 0.0
          %1123 = vmatpush1.msra.mxu0 0.0
          %1124 = vmatprep.subr.mxu0 0.0
          %1125 = vmatpush1.msra.mxu0 0.0
          %1126 = vmatprep.subr.mxu0 0.0
          %1127 = vmatpush1.msra.mxu0 0.0
          %1128 = vmatprep.subr.mxu0 0.0
          %1129 = vmatpush1.msra.mxu0 0.0
          %1130 = vmatprep.subr.mxu0 0.0
          %1131 = vmatpush1.msra.mxu0 0.0
          %1132 = vmatprep.subr.mxu0 0.0
          %1133 = vmatpush1.msra.mxu0 0.0
          %1134 = vmatprep.subr.mxu0 0.0
          %1135 = vmatpush1.msra.mxu0 0.0
          %1136 = vmatprep.subr.mxu0 0.0
          %1137 = vmatpush1.msra.mxu0 0.0
          %1138 = vmatprep.subr.mxu0 0.0
          %1139 = vmatpush1.msra.mxu0 0.0
          %1140 = vmatprep.subr.mxu0 0.0
          %1141 = vmatpush1.msra.mxu0 0.0
          %1142 = vmatprep.subr.mxu0 0.0
          %1143 = vmatpush1.msra.mxu0 0.0
          %1144 = vmatprep.subr.mxu0 0.0
          %1145 = vmatpush1.msra.mxu0 0.0
          %1146 = vmatprep.subr.mxu0 0.0
          %1147 = vmatpush1.msra.mxu0 0.0
          %1148 = vmatprep.subr.mxu0 0.0
          %1149 = vmatpush1.msra.mxu0 0.0
          %1150 = vmatprep.subr.mxu0 0.0
          %1151 = vmatpush1.msra.mxu0 0.0
          %1152 = vmatprep.subr.mxu0 0.0
          %1153 = vmatpush1.msra.mxu0 0.0
          %1154 = vmatprep.subr.mxu0 0.0
          %1155 = vmatpush1.msra.mxu0 0.0
          %1156 = vmatprep.subr.mxu0 0.0
          %1157 = vmatpush1.msra.mxu0 0.0
          %1158 = vmatprep.subr.mxu0 0.0
          %1159 = vmatpush1.msra.mxu0 0.0
          %1160 = vmatprep.subr.mxu0 0.0
          %1161 = vmatpush1.msra.mxu0 0.0
          %1162 = vmatprep.mubr.f32.mxu0 0.0
          %1163 = vmatmul.mubr.f32.gmra.mrb[0].mxu0 %v925
          %v1164 = vpop.f32.mrb[0].mxu0
          %v1165 = vadd.f32 0.0, %v1164
          %v1166 = vpop.f32.mrb[0].mxu0
          %1167 = vmatprep.mubr.f32.mxu0 0.0
          %1168 = vmatmul.mubr.f32.gmra.mrb[0].mxu0 %v928
          %v1169 = vpop.f32.mrb[0].mxu0
          %v1170 = vadd.f32 0.0, %v1169
          %v1171 = vpop.f32.mrb[0].mxu0
          %1172 = vmatprep.mubr.f32.mxu0 0.0
          %1173 = vmatmul.mubr.f32.gmra.mrb[0].mxu0 %v931
          %v1174 = vpop.f32.mrb[0].mxu0
          %v1175 = vadd.f32 0.0, %v1174
          %v1176 = vpop.f32.mrb[0].mxu0
          %1177 = vmatprep.mubr.f32.mxu0 0.0
          %1178 = vmatmul.mubr.f32.gmra.mrb[0].mxu0 %v934
          %v1179 = vpop.f32.mrb[0].mxu0
          %v1180 = vadd.f32 0.0, %v1179
          %v1181 = vpop.f32.mrb[0].mxu0
          %1182 = vmatprep.mubr.f32.mxu0 0.0
          %1183 = vmatmul.mubr.f32.gmra.mrb[0].mxu0 %v937
          %v1184 = vpop.f32.mrb[0].mxu0
          %v1185 = vadd.f32 0.0, %v1184
          %v1186 = vpop.f32.mrb[0].mxu0
          %1187 = vmatprep.mubr.f32.mxu0 0.0
          %1188 = vmatmul.mubr.f32.gmra.mrb[0].mxu0 %v940
          %v1189 = vpop.f32.mrb[0].mxu0
          %v1190 = vadd.f32 0.0, %v1189
          %v1191 = vpop.f32.mrb[0].mxu0
          %1192 = vmatprep.mubr.f32.mxu0 0.0
          %1193 = vmatmul.mubr.f32.gmra.mrb[0].mxu0 %v943
          %v1194 = vpop.f32.mrb[0].mxu0
          %v1195 = vadd.f32 0.0, %v1194
          %v1196 = vpop.f32.mrb[0].mxu0
          %1197 = vmatprep.mubr.f32.mxu0 0.0
          %1198 = vmatmul.mubr.f32.gmra.mrb[0].mxu0 %v946
          %v1199 = vpop.f32.mrb[0].mxu0
          %v1200 = vadd.f32 0.0, %v1199
          %v1201 = vpop.f32.mrb[0].mxu0
          %1202 = vmatprep.mubr.f32.mxu0 0.0
          %1203 = vmatmul.mubr.f32.gmra.mrb[0].mxu0 %v949
          %v1204 = vpop.f32.mrb[0].mxu0
          %v1205 = vadd.f32 0.0, %v1204
          %v1206 = vpop.f32.mrb[0].mxu0
          %1207 = vmatprep.mubr.f32.mxu0 0.0
          %1208 = vmatmul.mubr.f32.gmra.mrb[0].mxu0 %v952
          %v1209 = vpop.f32.mrb[0].mxu0
          %v1210 = vadd.f32 0.0, %v1209
          %v1211 = vpop.f32.mrb[0].mxu0
          %1212 = vdwg.mxu0
          %1213 = vst.msk [vmem:[#allocation3] sm:$0xff] %vm642, %v1165
          %1214 = vst.msk [vmem:[#allocation3 + $0x8] sm:$0xff] %vm642, %v1170
          %1215 = vst.msk [vmem:[#allocation3 + $0x10] sm:$0xff] %vm642, %v1175
          %1216 = vst.msk [vmem:[#allocation3 + $0x18] sm:$0xff] %vm642, %v1180
          %1217 = vst.msk [vmem:[#allocation3 + $0x20] sm:$0xff] %vm642, %v1185
          %1218 = vst.msk [vmem:[#allocation3 + $0x28] sm:$0xff] %vm642, %v1190
          %1219 = vst.msk [vmem:[#allocation3 + $0x30] sm:$0xff] %vm642, %v1195
          %1220 = vst.msk [vmem:[#allocation3 + $0x38] sm:$0xff] %vm642, %v1200
          %1221 = vst.msk [vmem:[#allocation3 + $0x40] sm:$0xff] %vm642, %v1205
          %1222 = vst.msk [vmem:[#allocation3 + $0x48] sm:$0xff] %vm642, %v1210
        $region40: #{tpu_custom_call.1} parent=31 // pred_fallthru
          _
        %p1223 = scmp.eq.s32.totalorder %s26, 2
        // Predicated region
        $region41: #{tpu_custom_call.1} parent=31 // pred_check
          %p1224 = pneg %p1223
        $region42: #{tpu_custom_call.1} parent=31 // pred_check_branch
          %1226 = sbr.rel (%p1224) target = $region44
        $region43: #{tpu_custom_call.1} parent=31 // pred_region
          %v1227 = vld [vmem:[#allocation2] sm:$0xff]
          %v1228 = vld [vmem:[#allocation2 + $0x8] sm:$0xff]
          %v1229 = vld [vmem:[#allocation2 + $0x10] sm:$0xff]
          %v1230 = vld [vmem:[#allocation2 + $0x18] sm:$0xff]
          %v1231 = vld [vmem:[#allocation2 + $0x20] sm:$0xff]
          %v1232 = vld [vmem:[#allocation2 + $0x28] sm:$0xff]
          %v1233 = vld [vmem:[#allocation2 + $0x30] sm:$0xff]
          %v1234 = vld [vmem:[#allocation2 + $0x38] sm:$0xff]
          %v1235 = vld [vmem:[#allocation2 + $0x40] sm:$0xff]
          %v1236 = vld [vmem:[#allocation2 + $0x48] sm:$0xff]
          %s1237 = scalar_lea.vmem %s1, 144
          %v1238 = vld [vmem:[%s1237] sm:$0xff]
          %v1239 = vld [vmem:[%s1237 + $0x8] sm:$0xff]
          %v1240 = vld [vmem:[%s1237 + $0x10] sm:$0xff]
          %v1241 = vld [vmem:[%s1237 + $0x18] sm:$0xff]
          %v1242 = vld [vmem:[%s1237 + $0x20] sm:$0xff]
          %v1243 = vld [vmem:[%s1237 + $0x28] sm:$0xff]
          %v1244 = vld [vmem:[%s1237 + $0x30] sm:$0xff]
          %v1245 = vld [vmem:[%s1237 + $0x38] sm:$0xff]
          %v1246 = vld [vmem:[%s1237 + $0x40] sm:$0xff]
          %vm1247 = vcmask 588800
          %v1249 = vsel %vm1247, %v720, 0
          %v1252 = vsel %vm1247, %v721, 0
          %v1255 = vsel %vm1247, %v722, 0
          %v1258 = vsel %vm1247, %v723, 0
          %v1261 = vsel %vm1247, %v724, 0
          %v1264 = vsel %vm1247, %v725, 0
          %v1267 = vsel %vm1247, %v726, 0
          %v1270 = vsel %vm1247, %v727, 0
          %v1273 = vsel %vm1247, %v728, 0
          %v1276 = vsel %vm1247, %v729, 0
          %1278 = vmatprep.subr.mxu0 0.0
          %1279 = vmatpush1.msra.mxu0 %v1238
          %1280 = vmatprep.subr.mxu0 0.0
          %1281 = vmatpush1.msra.mxu0 %v1239
          %1282 = vmatprep.subr.mxu0 0.0
          %1283 = vmatpush1.msra.mxu0 %v1240
          %1284 = vmatprep.subr.mxu0 0.0
          %1285 = vmatpush1.msra.mxu0 %v1241
          %1286 = vmatprep.subr.mxu0 0.0
          %1287 = vmatpush1.msra.mxu0 %v1242
          %1288 = vmatprep.subr.mxu0 0.0
          %1289 = vmatpush1.msra.mxu0 %v1243
          %1290 = vmatprep.subr.mxu0 0.0
          %1291 = vmatpush1.msra.mxu0 %v1244
          %1292 = vmatprep.subr.mxu0 0.0
          %1293 = vmatpush1.msra.mxu0 %v1245
          %1294 = vmatprep.subr.mxu0 0.0
          %1295 = vmatpush1.msra.mxu0 %v1246
          %1296 = vmatprep.subr.mxu0 0.0
          %1297 = vmatpush1.msra.mxu0 0.0
          %1298 = vmatprep.subr.mxu0 0.0
          %1299 = vmatpush1.msra.mxu0 0.0
          %1300 = vmatprep.subr.mxu0 0.0
          %1301 = vmatpush1.msra.mxu0 0.0
          %1302 = vmatprep.subr.mxu0 0.0
          %1303 = vmatpush1.msra.mxu0 0.0
          %1304 = vmatprep.subr.mxu0 0.0
          %1305 = vmatpush1.msra.mxu0 0.0
          %1306 = vmatprep.subr.mxu0 0.0
          %1307 = vmatpush1.msra.mxu0 0.0
          %1308 = vmatprep.subr.mxu0 0.0
          %1309 = vmatpush1.msra.mxu0 0.0
          %1310 = vmatprep.subr.mxu0 0.0
          %1311 = vmatpush1.msra.mxu0 0.0
          %1312 = vmatprep.subr.mxu0 0.0
          %1313 = vmatpush1.msra.mxu0 0.0
          %1314 = vmatprep.subr.mxu0 0.0
          %1315 = vmatpush1.msra.mxu0 0.0
          %1316 = vmatprep.subr.mxu0 0.0
          %1317 = vmatpush1.msra.mxu0 0.0
          %1318 = vmatprep.subr.mxu0 0.0
          %1319 = vmatpush1.msra.mxu0 0.0
          %1320 = vmatprep.subr.mxu0 0.0
          %1321 = vmatpush1.msra.mxu0 0.0
          %1322 = vmatprep.subr.mxu0 0.0
          %1323 = vmatpush1.msra.mxu0 0.0
          %1324 = vmatprep.subr.mxu0 0.0
          %1325 = vmatpush1.msra.mxu0 0.0
          %1326 = vmatprep.subr.mxu0 0.0
          %1327 = vmatpush1.msra.mxu0 0.0
          %1328 = vmatprep.subr.mxu0 0.0
          %1329 = vmatpush1.msra.mxu0 0.0
          %1330 = vmatprep.subr.mxu0 0.0
          %1331 = vmatpush1.msra.mxu0 0.0
          %1332 = vmatprep.subr.mxu0 0.0
          %1333 = vmatpush1.msra.mxu0 0.0
          %1334 = vmatprep.subr.mxu0 0.0
          %1335 = vmatpush1.msra.mxu0 0.0
          %1336 = vmatprep.subr.mxu0 0.0
          %1337 = vmatpush1.msra.mxu0 0.0
          %1338 = vmatprep.subr.mxu0 0.0
          %1339 = vmatpush1.msra.mxu0 0.0
          %1340 = vmatprep.subr.mxu0 0.0
          %1341 = vmatpush1.msra.mxu0 0.0
          %1342 = vmatprep.mubr.f32.mxu0 0.0
          %1343 = vmatmul.mubr.f32.gmra.mrb[0].mxu0 %v1249
          %v1344 = vpop.f32.mrb[0].mxu0
          %v1345 = vadd.f32 0.0, %v1344
          %v1346 = vpop.f32.mrb[0].mxu0
          %1347 = vmatprep.mubr.f32.mxu0 0.0
          %1348 = vmatmul.mubr.f32.gmra.mrb[0].mxu0 %v1252
          %v1349 = vpop.f32.mrb[0].mxu0
          %v1350 = vadd.f32 0.0, %v1349
          %v1351 = vpop.f32.mrb[0].mxu0
          %1352 = vmatprep.mubr.f32.mxu0 0.0
          %1353 = vmatmul.mubr.f32.gmra.mrb[0].mxu0 %v1255
          %v1354 = vpop.f32.mrb[0].mxu0
          %v1355 = vadd.f32 0.0, %v1354
          %v1356 = vpop.f32.mrb[0].mxu0
          %1357 = vmatprep.mubr.f32.mxu0 0.0
          %1358 = vmatmul.mubr.f32.gmra.mrb[0].mxu0 %v1258
          %v1359 = vpop.f32.mrb[0].mxu0
          %v1360 = vadd.f32 0.0, %v1359
          %v1361 = vpop.f32.mrb[0].mxu0
          %1362 = vmatprep.mubr.f32.mxu0 0.0
          %1363 = vmatmul.mubr.f32.gmra.mrb[0].mxu0 %v1261
          %v1364 = vpop.f32.mrb[0].mxu0
          %v1365 = vadd.f32 0.0, %v1364
          %v1366 = vpop.f32.mrb[0].mxu0
          %1367 = vmatprep.mubr.f32.mxu0 0.0
          %1368 = vmatmul.mubr.f32.gmra.mrb[0].mxu0 %v1264
          %v1369 = vpop.f32.mrb[0].mxu0
          %v1370 = vadd.f32 0.0, %v1369
          %v1371 = vpop.f32.mrb[0].mxu0
          %1372 = vmatprep.mubr.f32.mxu0 0.0
          %1373 = vmatmul.mubr.f32.gmra.mrb[0].mxu0 %v1267
          %v1374 = vpop.f32.mrb[0].mxu0
          %v1375 = vadd.f32 0.0, %v1374
          %v1376 = vpop.f32.mrb[0].mxu0
          %1377 = vmatprep.mubr.f32.mxu0 0.0
          %1378 = vmatmul.mubr.f32.gmra.mrb[0].mxu0 %v1270
          %v1379 = vpop.f32.mrb[0].mxu0
          %v1380 = vadd.f32 0.0, %v1379
          %v1381 = vpop.f32.mrb[0].mxu0
          %1382 = vmatprep.mubr.f32.mxu0 0.0
          %1383 = vmatmul.mubr.f32.gmra.mrb[0].mxu0 %v1273
          %v1384 = vpop.f32.mrb[0].mxu0
          %v1385 = vadd.f32 0.0, %v1384
          %v1386 = vpop.f32.mrb[0].mxu0
          %1387 = vmatprep.mubr.f32.mxu0 0.0
          %1388 = vmatmul.mubr.f32.gmra.mrb[0].mxu0 %v1276
          %v1389 = vpop.f32.mrb[0].mxu0
          %v1390 = vadd.f32 0.0, %v1389
          %v1391 = vpop.f32.mrb[0].mxu0
          %1392 = vdwg.mxu0
          %v1393 = vadd.f32 %v1227, %v1345
          %v1394 = vadd.f32 %v1228, %v1350
          %v1395 = vadd.f32 %v1229, %v1355
          %v1396 = vadd.f32 %v1230, %v1360
          %v1397 = vadd.f32 %v1231, %v1365
          %v1398 = vadd.f32 %v1232, %v1370
          %v1399 = vadd.f32 %v1233, %v1375
          %v1400 = vadd.f32 %v1234, %v1380
          %v1401 = vadd.f32 %v1235, %v1385
          %v1402 = vadd.f32 %v1236, %v1390
          %1403 = vst.msk [vmem:[#allocation2] sm:$0xff] %vm642, %v1393
          %1404 = vst.msk [vmem:[#allocation2 + $0x8] sm:$0xff] %vm642, %v1394
          %1405 = vst.msk [vmem:[#allocation2 + $0x10] sm:$0xff] %vm642, %v1395
          %1406 = vst.msk [vmem:[#allocation2 + $0x18] sm:$0xff] %vm642, %v1396
          %1407 = vst.msk [vmem:[#allocation2 + $0x20] sm:$0xff] %vm642, %v1397
          %1408 = vst.msk [vmem:[#allocation2 + $0x28] sm:$0xff] %vm642, %v1398
          %1409 = vst.msk [vmem:[#allocation2 + $0x30] sm:$0xff] %vm642, %v1399
          %1410 = vst.msk [vmem:[#allocation2 + $0x38] sm:$0xff] %vm642, %v1400
          %1411 = vst.msk [vmem:[#allocation2 + $0x40] sm:$0xff] %vm642, %v1401
          %1412 = vst.msk [vmem:[#allocation2 + $0x48] sm:$0xff] %vm642, %v1402
          %v1413 = vld [vmem:[#allocation3] sm:$0xff]
          %v1414 = vld [vmem:[#allocation3 + $0x8] sm:$0xff]
          %v1415 = vld [vmem:[#allocation3 + $0x10] sm:$0xff]
          %v1416 = vld [vmem:[#allocation3 + $0x18] sm:$0xff]
          %v1417 = vld [vmem:[#allocation3 + $0x20] sm:$0xff]
          %v1418 = vld [vmem:[#allocation3 + $0x28] sm:$0xff]
          %v1419 = vld [vmem:[#allocation3 + $0x30] sm:$0xff]
          %v1420 = vld [vmem:[#allocation3 + $0x38] sm:$0xff]
          %v1421 = vld [vmem:[#allocation3 + $0x40] sm:$0xff]
          %v1422 = vld [vmem:[#allocation3 + $0x48] sm:$0xff]
          %s1423 = scalar_lea.vmem %s1, 72
          %v1424 = vld [vmem:[%s1423] sm:$0xff]
          %v1425 = vld [vmem:[%s1423 + $0x8] sm:$0xff]
          %v1426 = vld [vmem:[%s1423 + $0x10] sm:$0xff]
          %v1427 = vld [vmem:[%s1423 + $0x18] sm:$0xff]
          %v1428 = vld [vmem:[%s1423 + $0x20] sm:$0xff]
          %v1429 = vld [vmem:[%s1423 + $0x28] sm:$0xff]
          %v1430 = vld [vmem:[%s1423 + $0x30] sm:$0xff]
          %v1431 = vld [vmem:[%s1423 + $0x38] sm:$0xff]
          %v1432 = vld [vmem:[%s1423 + $0x40] sm:$0xff]
          %1433 = vmatprep.subr.mxu0 0.0
          %1434 = vmatpush1.msra.mxu0 %v1424
          %1435 = vmatprep.subr.mxu0 0.0
          %1436 = vmatpush1.msra.mxu0 %v1425
          %1437 = vmatprep.subr.mxu0 0.0
          %1438 = vmatpush1.msra.mxu0 %v1426
          %1439 = vmatprep.subr.mxu0 0.0
          %1440 = vmatpush1.msra.mxu0 %v1427
          %1441 = vmatprep.subr.mxu0 0.0
          %1442 = vmatpush1.msra.mxu0 %v1428
          %1443 = vmatprep.subr.mxu0 0.0
          %1444 = vmatpush1.msra.mxu0 %v1429
          %1445 = vmatprep.subr.mxu0 0.0
          %1446 = vmatpush1.msra.mxu0 %v1430
          %1447 = vmatprep.subr.mxu0 0.0
          %1448 = vmatpush1.msra.mxu0 %v1431
          %1449 = vmatprep.subr.mxu0 0.0
          %1450 = vmatpush1.msra.mxu0 %v1432
          %1451 = vmatprep.subr.mxu0 0.0
          %1452 = vmatpush1.msra.mxu0 0.0
          %1453 = vmatprep.subr.mxu0 0.0
          %1454 = vmatpush1.msra.mxu0 0.0
          %1455 = vmatprep.subr.mxu0 0.0
          %1456 = vmatpush1.msra.mxu0 0.0
          %1457 = vmatprep.subr.mxu0 0.0
          %1458 = vmatpush1.msra.mxu0 0.0
          %1459 = vmatprep.subr.mxu0 0.0
          %1460 = vmatpush1.msra.mxu0 0.0
          %1461 = vmatprep.subr.mxu0 0.0
          %1462 = vmatpush1.msra.mxu0 0.0
          %1463 = vmatprep.subr.mxu0 0.0
          %1464 = vmatpush1.msra.mxu0 0.0
          %1465 = vmatprep.subr.mxu0 0.0
          %1466 = vmatpush1.msra.mxu0 0.0
          %1467 = vmatprep.subr.mxu0 0.0
          %1468 = vmatpush1.msra.mxu0 0.0
          %1469 = vmatprep.subr.mxu0 0.0
          %1470 = vmatpush1.msra.mxu0 0.0
          %1471 = vmatprep.subr.mxu0 0.0
          %1472 = vmatpush1.msra.mxu0 0.0
          %1473 = vmatprep.subr.mxu0 0.0
          %1474 = vmatpush1.msra.mxu0 0.0
          %1475 = vmatprep.subr.mxu0 0.0
          %1476 = vmatpush1.msra.mxu0 0.0
          %1477 = vmatprep.subr.mxu0 0.0
          %1478 = vmatpush1.msra.mxu0 0.0
          %1479 = vmatprep.subr.mxu0 0.0
          %1480 = vmatpush1.msra.mxu0 0.0
          %1481 = vmatprep.subr.mxu0 0.0
          %1482 = vmatpush1.msra.mxu0 0.0
          %1483 = vmatprep.subr.mxu0 0.0
          %1484 = vmatpush1.msra.mxu0 0.0
          %1485 = vmatprep.subr.mxu0 0.0
          %1486 = vmatpush1.msra.mxu0 0.0
          %1487 = vmatprep.subr.mxu0 0.0
          %1488 = vmatpush1.msra.mxu0 0.0
          %1489 = vmatprep.subr.mxu0 0.0
          %1490 = vmatpush1.msra.mxu0 0.0
          %1491 = vmatprep.subr.mxu0 0.0
          %1492 = vmatpush1.msra.mxu0 0.0
          %1493 = vmatprep.subr.mxu0 0.0
          %1494 = vmatpush1.msra.mxu0 0.0
          %1495 = vmatprep.subr.mxu0 0.0
          %1496 = vmatpush1.msra.mxu0 0.0
          %1497 = vmatprep.mubr.f32.mxu0 0.0
          %1498 = vmatmul.mubr.f32.gmra.mrb[0].mxu0 %v1249
          %v1499 = vpop.f32.mrb[0].mxu0
          %v1500 = vadd.f32 0.0, %v1499
          %v1501 = vpop.f32.mrb[0].mxu0
          %1502 = vmatprep.mubr.f32.mxu0 0.0
          %1503 = vmatmul.mubr.f32.gmra.mrb[0].mxu0 %v1252
          %v1504 = vpop.f32.mrb[0].mxu0
          %v1505 = vadd.f32 0.0, %v1504
          %v1506 = vpop.f32.mrb[0].mxu0
          %1507 = vmatprep.mubr.f32.mxu0 0.0
          %1508 = vmatmul.mubr.f32.gmra.mrb[0].mxu0 %v1255
          %v1509 = vpop.f32.mrb[0].mxu0
          %v1510 = vadd.f32 0.0, %v1509
          %v1511 = vpop.f32.mrb[0].mxu0
          %1512 = vmatprep.mubr.f32.mxu0 0.0
          %1513 = vmatmul.mubr.f32.gmra.mrb[0].mxu0 %v1258
          %v1514 = vpop.f32.mrb[0].mxu0
          %v1515 = vadd.f32 0.0, %v1514
          %v1516 = vpop.f32.mrb[0].mxu0
          %1517 = vmatprep.mubr.f32.mxu0 0.0
          %1518 = vmatmul.mubr.f32.gmra.mrb[0].mxu0 %v1261
          %v1519 = vpop.f32.mrb[0].mxu0
          %v1520 = vadd.f32 0.0, %v1519
          %v1521 = vpop.f32.mrb[0].mxu0
          %1522 = vmatprep.mubr.f32.mxu0 0.0
          %1523 = vmatmul.mubr.f32.gmra.mrb[0].mxu0 %v1264
          %v1524 = vpop.f32.mrb[0].mxu0
          %v1525 = vadd.f32 0.0, %v1524
          %v1526 = vpop.f32.mrb[0].mxu0
          %1527 = vmatprep.mubr.f32.mxu0 0.0
          %1528 = vmatmul.mubr.f32.gmra.mrb[0].mxu0 %v1267
          %v1529 = vpop.f32.mrb[0].mxu0
          %v1530 = vadd.f32 0.0, %v1529
          %v1531 = vpop.f32.mrb[0].mxu0
          %1532 = vmatprep.mubr.f32.mxu0 0.0
          %1533 = vmatmul.mubr.f32.gmra.mrb[0].mxu0 %v1270
          %v1534 = vpop.f32.mrb[0].mxu0
          %v1535 = vadd.f32 0.0, %v1534
          %v1536 = vpop.f32.mrb[0].mxu0
          %1537 = vmatprep.mubr.f32.mxu0 0.0
          %1538 = vmatmul.mubr.f32.gmra.mrb[0].mxu0 %v1273
          %v1539 = vpop.f32.mrb[0].mxu0
          %v1540 = vadd.f32 0.0, %v1539
          %v1541 = vpop.f32.mrb[0].mxu0
          %1542 = vmatprep.mubr.f32.mxu0 0.0
          %1543 = vmatmul.mubr.f32.gmra.mrb[0].mxu0 %v1276
          %v1544 = vpop.f32.mrb[0].mxu0
          %v1545 = vadd.f32 0.0, %v1544
          %v1546 = vpop.f32.mrb[0].mxu0
          %1547 = vdwg.mxu0
          %v1548 = vadd.f32 %v1413, %v1500
          %v1549 = vadd.f32 %v1414, %v1505
          %v1550 = vadd.f32 %v1415, %v1510
          %v1551 = vadd.f32 %v1416, %v1515
          %v1552 = vadd.f32 %v1417, %v1520
          %v1553 = vadd.f32 %v1418, %v1525
          %v1554 = vadd.f32 %v1419, %v1530
          %v1555 = vadd.f32 %v1420, %v1535
          %v1556 = vadd.f32 %v1421, %v1540
          %v1557 = vadd.f32 %v1422, %v1545
          %1558 = vst.msk [vmem:[#allocation3] sm:$0xff] %vm642, %v1548
          %1559 = vst.msk [vmem:[#allocation3 + $0x8] sm:$0xff] %vm642, %v1549
          %1560 = vst.msk [vmem:[#allocation3 + $0x10] sm:$0xff] %vm642, %v1550
          %1561 = vst.msk [vmem:[#allocation3 + $0x18] sm:$0xff] %vm642, %v1551
          %1562 = vst.msk [vmem:[#allocation3 + $0x20] sm:$0xff] %vm642, %v1552
          %1563 = vst.msk [vmem:[#allocation3 + $0x28] sm:$0xff] %vm642, %v1553
          %1564 = vst.msk [vmem:[#allocation3 + $0x30] sm:$0xff] %vm642, %v1554
          %1565 = vst.msk [vmem:[#allocation3 + $0x38] sm:$0xff] %vm642, %v1555
          %1566 = vst.msk [vmem:[#allocation3 + $0x40] sm:$0xff] %vm642, %v1556
          %1567 = vst.msk [vmem:[#allocation3 + $0x48] sm:$0xff] %vm642, %v1557
        $region44: #{tpu_custom_call.1} parent=31 // pred_fallthru
          _
        %p1568 = scmp.eq.s32.totalorder %s26, 3
        // Predicated region
        $region45: #{tpu_custom_call.1} parent=31 // pred_check
          %p1569 = pneg %p1568
        $region46: #{tpu_custom_call.1} parent=31 // pred_check_branch
          %1571 = sbr.rel (%p1569) target = $region48
        $region47: #{tpu_custom_call.1} parent=31 // pred_region
          %v1572 = vld [vmem:[#allocation3] sm:$0xff]
          %v1573 = vld [vmem:[#allocation3 + $0x8] sm:$0xff]
          %v1574 = vld [vmem:[#allocation3 + $0x10] sm:$0xff]
          %v1575 = vld [vmem:[#allocation3 + $0x18] sm:$0xff]
          %v1576 = vld [vmem:[#allocation3 + $0x20] sm:$0xff]
          %v1577 = vld [vmem:[#allocation3 + $0x28] sm:$0xff]
          %v1578 = vld [vmem:[#allocation3 + $0x30] sm:$0xff]
          %v1579 = vld [vmem:[#allocation3 + $0x38] sm:$0xff]
          %v1580 = vld [vmem:[#allocation3 + $0x40] sm:$0xff]
          %v1581 = vld [vmem:[#allocation3 + $0x48] sm:$0xff]
          %s1582 = scalar_lea.vmem %s1, 144
          %v1583 = vld [vmem:[%s1582] sm:$0xff]
          %v1584 = vld [vmem:[%s1582 + $0x8] sm:$0xff]
          %v1585 = vld [vmem:[%s1582 + $0x10] sm:$0xff]
          %v1586 = vld [vmem:[%s1582 + $0x18] sm:$0xff]
          %v1587 = vld [vmem:[%s1582 + $0x20] sm:$0xff]
          %v1588 = vld [vmem:[%s1582 + $0x28] sm:$0xff]
          %v1589 = vld [vmem:[%s1582 + $0x30] sm:$0xff]
          %v1590 = vld [vmem:[%s1582 + $0x38] sm:$0xff]
          %v1591 = vld [vmem:[%s1582 + $0x40] sm:$0xff]
          %vm1592 = vcmask 588800
          %v1594 = vsel %vm1592, %v720, 0
          %v1597 = vsel %vm1592, %v721, 0
          %v1600 = vsel %vm1592, %v722, 0
          %v1603 = vsel %vm1592, %v723, 0
          %v1606 = vsel %vm1592, %v724, 0
          %v1609 = vsel %vm1592, %v725, 0
          %v1612 = vsel %vm1592, %v726, 0
          %v1615 = vsel %vm1592, %v727, 0
          %v1618 = vsel %vm1592, %v728, 0
          %v1621 = vsel %vm1592, %v729, 0
          %1623 = vmatprep.subr.mxu0 0.0
          %1624 = vmatpush1.msra.mxu0 %v1583
          %1625 = vmatprep.subr.mxu0 0.0
          %1626 = vmatpush1.msra.mxu0 %v1584
          %1627 = vmatprep.subr.mxu0 0.0
          %1628 = vmatpush1.msra.mxu0 %v1585
          %1629 = vmatprep.subr.mxu0 0.0
          %1630 = vmatpush1.msra.mxu0 %v1586
          %1631 = vmatprep.subr.mxu0 0.0
          %1632 = vmatpush1.msra.mxu0 %v1587
          %1633 = vmatprep.subr.mxu0 0.0
          %1634 = vmatpush1.msra.mxu0 %v1588
          %1635 = vmatprep.subr.mxu0 0.0
          %1636 = vmatpush1.msra.mxu0 %v1589
          %1637 = vmatprep.subr.mxu0 0.0
          %1638 = vmatpush1.msra.mxu0 %v1590
          %1639 = vmatprep.subr.mxu0 0.0
          %1640 = vmatpush1.msra.mxu0 %v1591
          %1641 = vmatprep.subr.mxu0 0.0
          %1642 = vmatpush1.msra.mxu0 0.0
          %1643 = vmatprep.subr.mxu0 0.0
          %1644 = vmatpush1.msra.mxu0 0.0
          %1645 = vmatprep.subr.mxu0 0.0
          %1646 = vmatpush1.msra.mxu0 0.0
          %1647 = vmatprep.subr.mxu0 0.0
          %1648 = vmatpush1.msra.mxu0 0.0
          %1649 = vmatprep.subr.mxu0 0.0
          %1650 = vmatpush1.msra.mxu0 0.0
          %1651 = vmatprep.subr.mxu0 0.0
          %1652 = vmatpush1.msra.mxu0 0.0
          %1653 = vmatprep.subr.mxu0 0.0
          %1654 = vmatpush1.msra.mxu0 0.0
          %1655 = vmatprep.subr.mxu0 0.0
          %1656 = vmatpush1.msra.mxu0 0.0
          %1657 = vmatprep.subr.mxu0 0.0
          %1658 = vmatpush1.msra.mxu0 0.0
          %1659 = vmatprep.subr.mxu0 0.0
          %1660 = vmatpush1.msra.mxu0 0.0
          %1661 = vmatprep.subr.mxu0 0.0
          %1662 = vmatpush1.msra.mxu0 0.0
          %1663 = vmatprep.subr.mxu0 0.0
          %1664 = vmatpush1.msra.mxu0 0.0
          %1665 = vmatprep.subr.mxu0 0.0
          %1666 = vmatpush1.msra.mxu0 0.0
          %1667 = vmatprep.subr.mxu0 0.0
          %1668 = vmatpush1.msra.mxu0 0.0
          %1669 = vmatprep.subr.mxu0 0.0
          %1670 = vmatpush1.msra.mxu0 0.0
          %1671 = vmatprep.subr.mxu0 0.0
          %1672 = vmatpush1.msra.mxu0 0.0
          %1673 = vmatprep.subr.mxu0 0.0
          %1674 = vmatpush1.msra.mxu0 0.0
          %1675 = vmatprep.subr.mxu0 0.0
          %1676 = vmatpush1.msra.mxu0 0.0
          %1677 = vmatprep.subr.mxu0 0.0
          %1678 = vmatpush1.msra.mxu0 0.0
          %1679 = vmatprep.subr.mxu0 0.0
          %1680 = vmatpush1.msra.mxu0 0.0
          %1681 = vmatprep.subr.mxu0 0.0
          %1682 = vmatpush1.msra.mxu0 0.0
          %1683 = vmatprep.subr.mxu0 0.0
          %1684 = vmatpush1.msra.mxu0 0.0
          %1685 = vmatprep.subr.mxu0 0.0
          %1686 = vmatpush1.msra.mxu0 0.0
          %1687 = vmatprep.mubr.f32.mxu0 0.0
          %1688 = vmatmul.mubr.f32.gmra.mrb[0].mxu0 %v1594
          %v1689 = vpop.f32.mrb[0].mxu0
          %v1690 = vadd.f32 0.0, %v1689
          %v1691 = vpop.f32.mrb[0].mxu0
          %1692 = vmatprep.mubr.f32.mxu0 0.0
          %1693 = vmatmul.mubr.f32.gmra.mrb[0].mxu0 %v1597
          %v1694 = vpop.f32.mrb[0].mxu0
          %v1695 = vadd.f32 0.0, %v1694
          %v1696 = vpop.f32.mrb[0].mxu0
          %1697 = vmatprep.mubr.f32.mxu0 0.0
          %1698 = vmatmul.mubr.f32.gmra.mrb[0].mxu0 %v1600
          %v1699 = vpop.f32.mrb[0].mxu0
          %v1700 = vadd.f32 0.0, %v1699
          %v1701 = vpop.f32.mrb[0].mxu0
          %1702 = vmatprep.mubr.f32.mxu0 0.0
          %1703 = vmatmul.mubr.f32.gmra.mrb[0].mxu0 %v1603
          %v1704 = vpop.f32.mrb[0].mxu0
          %v1705 = vadd.f32 0.0, %v1704
          %v1706 = vpop.f32.mrb[0].mxu0
          %1707 = vmatprep.mubr.f32.mxu0 0.0
          %1708 = vmatmul.mubr.f32.gmra.mrb[0].mxu0 %v1606
          %v1709 = vpop.f32.mrb[0].mxu0
          %v1710 = vadd.f32 0.0, %v1709
          %v1711 = vpop.f32.mrb[0].mxu0
          %1712 = vmatprep.mubr.f32.mxu0 0.0
          %1713 = vmatmul.mubr.f32.gmra.mrb[0].mxu0 %v1609
          %v1714 = vpop.f32.mrb[0].mxu0
          %v1715 = vadd.f32 0.0, %v1714
          %v1716 = vpop.f32.mrb[0].mxu0
          %1717 = vmatprep.mubr.f32.mxu0 0.0
          %1718 = vmatmul.mubr.f32.gmra.mrb[0].mxu0 %v1612
          %v1719 = vpop.f32.mrb[0].mxu0
          %v1720 = vadd.f32 0.0, %v1719
          %v1721 = vpop.f32.mrb[0].mxu0
          %1722 = vmatprep.mubr.f32.mxu0 0.0
          %1723 = vmatmul.mubr.f32.gmra.mrb[0].mxu0 %v1615
          %v1724 = vpop.f32.mrb[0].mxu0
          %v1725 = vadd.f32 0.0, %v1724
          %v1726 = vpop.f32.mrb[0].mxu0
          %1727 = vmatprep.mubr.f32.mxu0 0.0
          %1728 = vmatmul.mubr.f32.gmra.mrb[0].mxu0 %v1618
          %v1729 = vpop.f32.mrb[0].mxu0
          %v1730 = vadd.f32 0.0, %v1729
          %v1731 = vpop.f32.mrb[0].mxu0
          %1732 = vmatprep.mubr.f32.mxu0 0.0
          %1733 = vmatmul.mubr.f32.gmra.mrb[0].mxu0 %v1621
          %v1734 = vpop.f32.mrb[0].mxu0
          %v1735 = vadd.f32 0.0, %v1734
          %v1736 = vpop.f32.mrb[0].mxu0
          %1737 = vdwg.mxu0
          %v1738 = vadd.f32 %v1572, %v1690
          %v1739 = vadd.f32 %v1573, %v1695
          %v1740 = vadd.f32 %v1574, %v1700
          %v1741 = vadd.f32 %v1575, %v1705
          %v1742 = vadd.f32 %v1576, %v1710
          %v1743 = vadd.f32 %v1577, %v1715
          %v1744 = vadd.f32 %v1578, %v1720
          %v1745 = vadd.f32 %v1579, %v1725
          %v1746 = vadd.f32 %v1580, %v1730
          %v1747 = vadd.f32 %v1581, %v1735
          %1748 = vst.msk [vmem:[#allocation3] sm:$0xff] %vm642, %v1738
          %1749 = vst.msk [vmem:[#allocation3 + $0x8] sm:$0xff] %vm642, %v1739
          %1750 = vst.msk [vmem:[#allocation3 + $0x10] sm:$0xff] %vm642, %v1740
          %1751 = vst.msk [vmem:[#allocation3 + $0x18] sm:$0xff] %vm642, %v1741
          %1752 = vst.msk [vmem:[#allocation3 + $0x20] sm:$0xff] %vm642, %v1742
          %1753 = vst.msk [vmem:[#allocation3 + $0x28] sm:$0xff] %vm642, %v1743
          %1754 = vst.msk [vmem:[#allocation3 + $0x30] sm:$0xff] %vm642, %v1744
          %1755 = vst.msk [vmem:[#allocation3 + $0x38] sm:$0xff] %vm642, %v1745
          %1756 = vst.msk [vmem:[#allocation3 + $0x40] sm:$0xff] %vm642, %v1746
          %1757 = vst.msk [vmem:[#allocation3 + $0x48] sm:$0xff] %vm642, %v1747
          %v1758 = vld [vmem:[#allocation2] sm:$0xff]
          %v1759 = vld [vmem:[#allocation2 + $0x8] sm:$0xff]
          %v1760 = vld [vmem:[#allocation2 + $0x10] sm:$0xff]
          %v1761 = vld [vmem:[#allocation2 + $0x18] sm:$0xff]
          %v1762 = vld [vmem:[#allocation2 + $0x20] sm:$0xff]
          %v1763 = vld [vmem:[#allocation2 + $0x28] sm:$0xff]
          %v1764 = vld [vmem:[#allocation2 + $0x30] sm:$0xff]
          %v1765 = vld [vmem:[#allocation2 + $0x38] sm:$0xff]
          %v1766 = vld [vmem:[#allocation2 + $0x40] sm:$0xff]
          %v1767 = vld [vmem:[#allocation2 + $0x48] sm:$0xff]
          %v1768 = vld [vmem:[#allocation3] sm:$0xff]
          %v1769 = vld [vmem:[#allocation3 + $0x8] sm:$0xff]
          %v1770 = vld [vmem:[#allocation3 + $0x10] sm:$0xff]
          %v1771 = vld [vmem:[#allocation3 + $0x18] sm:$0xff]
          %v1772 = vld [vmem:[#allocation3 + $0x20] sm:$0xff]
          %v1773 = vld [vmem:[#allocation3 + $0x28] sm:$0xff]
          %v1774 = vld [vmem:[#allocation3 + $0x30] sm:$0xff]
          %v1775 = vld [vmem:[#allocation3 + $0x38] sm:$0xff]
          %v1776 = vld [vmem:[#allocation3 + $0x40] sm:$0xff]
          %v1777 = vld [vmem:[#allocation3 + $0x48] sm:$0xff]
          %v1778 = vmax.f32 %v1758, %v1768
          %v1779 = vmax.f32 %v1759, %v1769
          %v1780 = vmax.f32 %v1760, %v1770
          %v1781 = vmax.f32 %v1761, %v1771
          %v1782 = vmax.f32 %v1762, %v1772
          %v1783 = vmax.f32 %v1763, %v1773
          %v1784 = vmax.f32 %v1764, %v1774
          %v1785 = vmax.f32 %v1765, %v1775
          %v1786 = vmax.f32 %v1766, %v1776
          %v1787 = vmax.f32 %v1767, %v1777
          %v1798 = vcombine.high %v1778, %v1778
          %v1800 = vunpack.c.l.s4 1983009808
          %v1801 = vunpack.c.0.s8 %v1800
          %v1802 = vlaneseq
          %v1803 = vshrl.u32 %v1802, 7
          %v1804 = vsub.s32 %v1801, %v1803
          %v1805 = vrot.slane %v1778, %v1804
          %v1807 = vunpack.c.l.s4 1983009808
          %v1808 = vunpack.c.0.s8 %v1807
          %v1809 = vlaneseq
          %v1810 = vshrl.u32 %v1809, 7
          %v1811 = vsub.s32 %v1808, %v1810
          %v1812 = vrot.slane %v1798, %v1811
          %v1813 = vcombine.high %v1805, %v1805
          %v1814 = vcombine.high %v1812, %v1812
          %v1815 = vcombine.high %v1779, %v1779
          %v1817 = vunpack.c.l.s4 1983009808
          %v1818 = vunpack.c.0.s8 %v1817
          %v1819 = vlaneseq
          %v1820 = vshrl.u32 %v1819, 7
          %v1821 = vsub.s32 %v1818, %v1820
          %v1822 = vrot.slane %v1779, %v1821
          %v1824 = vunpack.c.l.s4 1983009808
          %v1825 = vunpack.c.0.s8 %v1824
          %v1826 = vlaneseq
          %v1827 = vshrl.u32 %v1826, 7
          %v1828 = vsub.s32 %v1825, %v1827
          %v1829 = vrot.slane %v1815, %v1828
          %v1830 = vcombine.high %v1822, %v1822
          %v1831 = vcombine.high %v1829, %v1829
          %v1832 = vcombine.high %v1780, %v1780
          %v1834 = vunpack.c.l.s4 1983009808
          %v1835 = vunpack.c.0.s8 %v1834
          %v1836 = vlaneseq
          %v1837 = vshrl.u32 %v1836, 7
          %v1838 = vsub.s32 %v1835, %v1837
          %v1839 = vrot.slane %v1780, %v1838
          %v1841 = vunpack.c.l.s4 1983009808
          %v1842 = vunpack.c.0.s8 %v1841
          %v1843 = vlaneseq
          %v1844 = vshrl.u32 %v1843, 7
          %v1845 = vsub.s32 %v1842, %v1844
          %v1846 = vrot.slane %v1832, %v1845
          %v1847 = vcombine.high %v1846, %v1846
          %v1848 = vcombine.high %v1781, %v1781
          %v1850 = vunpack.c.l.s4 1983009808
          %v1851 = vunpack.c.0.s8 %v1850
          %v1852 = vlaneseq
          %v1853 = vshrl.u32 %v1852, 7
          %v1854 = vsub.s32 %v1851, %v1853
          %v1855 = vrot.slane %v1781, %v1854
          %v1857 = vunpack.c.l.s4 1983009808
          %v1858 = vunpack.c.0.s8 %v1857
          %v1859 = vlaneseq
          %v1860 = vshrl.u32 %v1859, 7
          %v1861 = vsub.s32 %v1858, %v1860
          %v1862 = vrot.slane %v1848, %v1861
          %v1863 = vcombine.high %v1855, %v1855
          %v1864 = vcombine.high %v1862, %v1862
          %v1865 = vcombine.high %v1782, %v1782
          %v1867 = vunpack.c.l.s4 1983009808
          %v1868 = vunpack.c.0.s8 %v1867
          %v1869 = vlaneseq
          %v1870 = vshrl.u32 %v1869, 7
          %v1871 = vsub.s32 %v1868, %v1870
          %v1872 = vrot.slane %v1782, %v1871
          %v1874 = vunpack.c.l.s4 1983009808
          %v1875 = vunpack.c.0.s8 %v1874
          %v1876 = vlaneseq
          %v1877 = vshrl.u32 %v1876, 7
          %v1878 = vsub.s32 %v1875, %v1877
          %v1879 = vrot.slane %v1865, %v1878
          %v1880 = vcombine.high %v1872, %v1872
          %v1881 = vcombine.high %v1783, %v1783
          %v1883 = vunpack.c.l.s4 1983009808
          %v1884 = vunpack.c.0.s8 %v1883
          %v1885 = vlaneseq
          %v1886 = vshrl.u32 %v1885, 7
          %v1887 = vsub.s32 %v1884, %v1886
          %v1888 = vrot.slane %v1783, %v1887
          %v1890 = vunpack.c.l.s4 1983009808
          %v1891 = vunpack.c.0.s8 %v1890
          %v1892 = vlaneseq
          %v1893 = vshrl.u32 %v1892, 7
          %v1894 = vsub.s32 %v1891, %v1893
          %v1895 = vrot.slane %v1881, %v1894
          %v1896 = vcombine.high %v1888, %v1888
          %v1897 = vcombine.high %v1895, %v1895
          %v1898 = vcombine.high %v1784, %v1784
          %v1900 = vunpack.c.l.s4 1983009808
          %v1901 = vunpack.c.0.s8 %v1900
          %v1902 = vlaneseq
          %v1903 = vshrl.u32 %v1902, 7
          %v1904 = vsub.s32 %v1901, %v1903
          %v1905 = vrot.slane %v1784, %v1904
          %v1907 = vunpack.c.l.s4 1983009808
          %v1908 = vunpack.c.0.s8 %v1907
          %v1909 = vlaneseq
          %v1910 = vshrl.u32 %v1909, 7
          %v1911 = vsub.s32 %v1908, %v1910
          %v1912 = vrot.slane %v1898, %v1911
          %v1913 = vcombine.high %v1905, %v1905
          %v1914 = vcombine.high %v1912, %v1912
          %v1915 = vcombine.high %v1785, %v1785
          %v1917 = vunpack.c.l.s4 1983009808
          %v1918 = vunpack.c.0.s8 %v1917
          %v1919 = vlaneseq
          %v1920 = vshrl.u32 %v1919, 7
          %v1921 = vsub.s32 %v1918, %v1920
          %v1922 = vrot.slane %v1785, %v1921
          %v1924 = vunpack.c.l.s4 1983009808
          %v1925 = vunpack.c.0.s8 %v1924
          %v1926 = vlaneseq
          %v1927 = vshrl.u32 %v1926, 7
          %v1928 = vsub.s32 %v1925, %v1927
          %v1929 = vrot.slane %v1915, %v1928
          %v1930 = vcombine.high %v1929, %v1929
          %v1931 = vcombine.high %v1786, %v1786
          %v1933 = vunpack.c.l.s4 1983009808
          %v1934 = vunpack.c.0.s8 %v1933
          %v1935 = vlaneseq
          %v1936 = vshrl.u32 %v1935, 7
          %v1937 = vsub.s32 %v1934, %v1936
          %v1938 = vrot.slane %v1786, %v1937
          %v1940 = vunpack.c.l.s4 1983009808
          %v1941 = vunpack.c.0.s8 %v1940
          %v1942 = vlaneseq
          %v1943 = vshrl.u32 %v1942, 7
          %v1944 = vsub.s32 %v1941, %v1943
          %v1945 = vrot.slane %v1931, %v1944
          %v1946 = vcombine.high %v1938, %v1938
          %v1947 = vcombine.high %v1945, %v1945
          %v1948 = vcombine.high %v1787, %v1787
          %v1950 = vunpack.c.l.s4 1983009808
          %v1951 = vunpack.c.0.s8 %v1950
          %v1952 = vlaneseq
          %v1953 = vshrl.u32 %v1952, 7
          %v1954 = vsub.s32 %v1951, %v1953
          %v1955 = vrot.slane %v1787, %v1954
          %v1957 = vunpack.c.l.s4 1983009808
          %v1958 = vunpack.c.0.s8 %v1957
          %v1959 = vlaneseq
          %v1960 = vshrl.u32 %v1959, 7
          %v1961 = vsub.s32 %v1958, %v1960
          %v1962 = vrot.slane %v1948, %v1961
          %v1963 = vcombine.high %v1955, %v1955
          %vm1996 = vcmask 58368
          %v1997 = vsel %vm1996, %v1805, -inf
          %v1998 = vrot.slane %v1997, 4
          %v1999 = vmax.f32 %v1997, %v1998
          %v2000 = vrot.slane %v1999, 2
          %v2001 = vmax.f32 %v1999, %v2000
          %v2002 = vrot.slane %v2001, 1
          %v2003 = vmax.f32 %v2001, %v2002
          %v2004 = vsel %vm1996, %v1813, -inf
          %v2005 = vrot.slane %v2004, 4
          %v2006 = vmax.f32 %v2004, %v2005
          %v2007 = vrot.slane %v2006, 2
          %v2008 = vmax.f32 %v2006, %v2007
          %v2009 = vrot.slane %v2008, 1
          %v2010 = vmax.f32 %v2008, %v2009
          %v2011 = vsel %vm1996, %v1812, -inf
          %v2012 = vrot.slane %v2011, 4
          %v2013 = vmax.f32 %v2011, %v2012
          %v2014 = vrot.slane %v2013, 2
          %v2015 = vmax.f32 %v2013, %v2014
          %v2016 = vrot.slane %v2015, 1
          %v2017 = vmax.f32 %v2015, %v2016
          %v2018 = vsel %vm1996, %v1814, -inf
          %v2019 = vrot.slane %v2018, 4
          %v2020 = vmax.f32 %v2018, %v2019
          %v2021 = vrot.slane %v2020, 2
          %v2022 = vmax.f32 %v2020, %v2021
          %v2023 = vrot.slane %v2022, 1
          %v2024 = vmax.f32 %v2022, %v2023
          %v2025 = vsel %vm1996, %v1830, -inf
          %v2026 = vrot.slane %v2025, 4
          %v2027 = vmax.f32 %v2025, %v2026
          %v2028 = vrot.slane %v2027, 2
          %v2029 = vmax.f32 %v2027, %v2028
          %v2030 = vrot.slane %v2029, 1
          %v2031 = vmax.f32 %v2029, %v2030
          %v2032 = vsel %vm1996, %v1829, -inf
          %v2033 = vrot.slane %v2032, 4
          %v2034 = vmax.f32 %v2032, %v2033
          %v2035 = vrot.slane %v2034, 2
          %v2036 = vmax.f32 %v2034, %v2035
          %v2037 = vrot.slane %v2036, 1
          %v2038 = vmax.f32 %v2036, %v2037
          %v2039 = vsel %vm1996, %v1831, -inf
          %v2040 = vrot.slane %v2039, 4
          %v2041 = vmax.f32 %v2039, %v2040
          %v2042 = vrot.slane %v2041, 2
          %v2043 = vmax.f32 %v2041, %v2042
          %v2044 = vrot.slane %v2043, 1
          %v2045 = vmax.f32 %v2043, %v2044
          %v2046 = vsel %vm1996, %v1839, -inf
          %v2047 = vrot.slane %v2046, 4
          %v2048 = vmax.f32 %v2046, %v2047
          %v2049 = vrot.slane %v2048, 2
          %v2050 = vmax.f32 %v2048, %v2049
          %v2051 = vrot.slane %v2050, 1
          %v2052 = vmax.f32 %v2050, %v2051
          %v2053 = vsel %vm1996, %v1846, -inf
          %v2054 = vrot.slane %v2053, 4
          %v2055 = vmax.f32 %v2053, %v2054
          %v2056 = vrot.slane %v2055, 2
          %v2057 = vmax.f32 %v2055, %v2056
          %v2058 = vrot.slane %v2057, 1
          %v2059 = vmax.f32 %v2057, %v2058
          %v2060 = vsel %vm1996, %v1847, -inf
          %v2061 = vrot.slane %v2060, 4
          %v2062 = vmax.f32 %v2060, %v2061
          %v2063 = vrot.slane %v2062, 2
          %v2064 = vmax.f32 %v2062, %v2063
          %v2065 = vrot.slane %v2064, 1
          %v2066 = vmax.f32 %v2064, %v2065
          %v2067 = vsel %vm1996, %v1855, -inf
          %v2068 = vrot.slane %v2067, 4
          %v2069 = vmax.f32 %v2067, %v2068
          %v2070 = vrot.slane %v2069, 2
          %v2071 = vmax.f32 %v2069, %v2070
          %v2072 = vrot.slane %v2071, 1
          %v2073 = vmax.f32 %v2071, %v2072
          %v2074 = vsel %vm1996, %v1863, -inf
          %v2075 = vrot.slane %v2074, 4
          %v2076 = vmax.f32 %v2074, %v2075
          %v2077 = vrot.slane %v2076, 2
          %v2078 = vmax.f32 %v2076, %v2077
          %v2079 = vrot.slane %v2078, 1
          %v2080 = vmax.f32 %v2078, %v2079
          %v2081 = vsel %vm1996, %v1864, -inf
          %v2082 = vrot.slane %v2081, 4
          %v2083 = vmax.f32 %v2081, %v2082
          %v2084 = vrot.slane %v2083, 2
          %v2085 = vmax.f32 %v2083, %v2084
          %v2086 = vrot.slane %v2085, 1
          %v2087 = vmax.f32 %v2085, %v2086
          %v2088 = vsel %vm1996, %v1872, -inf
          %v2089 = vrot.slane %v2088, 4
          %v2090 = vmax.f32 %v2088, %v2089
          %v2091 = vrot.slane %v2090, 2
          %v2092 = vmax.f32 %v2090, %v2091
          %v2093 = vrot.slane %v2092, 1
          %v2094 = vmax.f32 %v2092, %v2093
          %v2095 = vsel %vm1996, %v1880, -inf
          %v2096 = vrot.slane %v2095, 4
          %v2097 = vmax.f32 %v2095, %v2096
          %v2098 = vrot.slane %v2097, 2
          %v2099 = vmax.f32 %v2097, %v2098
          %v2100 = vrot.slane %v2099, 1
          %v2101 = vmax.f32 %v2099, %v2100
          %v2102 = vsel %vm1996, %v1879, -inf
          %v2103 = vrot.slane %v2102, 4
          %v2104 = vmax.f32 %v2102, %v2103
          %v2105 = vrot.slane %v2104, 2
          %v2106 = vmax.f32 %v2104, %v2105
          %v2107 = vrot.slane %v2106, 1
          %v2108 = vmax.f32 %v2106, %v2107
          %v2109 = vsel %vm1996, %v1888, -inf
          %v2110 = vrot.slane %v2109, 4
          %v2111 = vmax.f32 %v2109, %v2110
          %v2112 = vrot.slane %v2111, 2
          %v2113 = vmax.f32 %v2111, %v2112
          %v2114 = vrot.slane %v2113, 1
          %v2115 = vmax.f32 %v2113, %v2114
          %v2116 = vsel %vm1996, %v1896, -inf
          %v2117 = vrot.slane %v2116, 4
          %v2118 = vmax.f32 %v2116, %v2117
          %v2119 = vrot.slane %v2118, 2
          %v2120 = vmax.f32 %v2118, %v2119
          %v2121 = vrot.slane %v2120, 1
          %v2122 = vmax.f32 %v2120, %v2121
          %v2123 = vsel %vm1996, %v1895, -inf
          %v2124 = vrot.slane %v2123, 4
          %v2125 = vmax.f32 %v2123, %v2124
          %v2126 = vrot.slane %v2125, 2
          %v2127 = vmax.f32 %v2125, %v2126
          %v2128 = vrot.slane %v2127, 1
          %v2129 = vmax.f32 %v2127, %v2128
          %v2130 = vsel %vm1996, %v1897, -inf
          %v2131 = vrot.slane %v2130, 4
          %v2132 = vmax.f32 %v2130, %v2131
          %v2133 = vrot.slane %v2132, 2
          %v2134 = vmax.f32 %v2132, %v2133
          %v2135 = vrot.slane %v2134, 1
          %v2136 = vmax.f32 %v2134, %v2135
          %v2137 = vsel %vm1996, %v1913, -inf
          %v2138 = vrot.slane %v2137, 4
          %v2139 = vmax.f32 %v2137, %v2138
          %v2140 = vrot.slane %v2139, 2
          %v2141 = vmax.f32 %v2139, %v2140
          %v2142 = vrot.slane %v2141, 1
          %v2143 = vmax.f32 %v2141, %v2142
          %v2144 = vsel %vm1996, %v1912, -inf
          %v2145 = vrot.slane %v2144, 4
          %v2146 = vmax.f32 %v2144, %v2145
          %v2147 = vrot.slane %v2146, 2
          %v2148 = vmax.f32 %v2146, %v2147
          %v2149 = vrot.slane %v2148, 1
          %v2150 = vmax.f32 %v2148, %v2149
          %v2151 = vsel %vm1996, %v1914, -inf
          %v2152 = vrot.slane %v2151, 4
          %v2153 = vmax.f32 %v2151, %v2152
          %v2154 = vrot.slane %v2153, 2
          %v2155 = vmax.f32 %v2153, %v2154
          %v2156 = vrot.slane %v2155, 1
          %v2157 = vmax.f32 %v2155, %v2156
          %v2158 = vsel %vm1996, %v1922, -inf
          %v2159 = vrot.slane %v2158, 4
          %v2160 = vmax.f32 %v2158, %v2159
          %v2161 = vrot.slane %v2160, 2
          %v2162 = vmax.f32 %v2160, %v2161
          %v2163 = vrot.slane %v2162, 1
          %v2164 = vmax.f32 %v2162, %v2163
          %v2165 = vsel %vm1996, %v1929, -inf
          %v2166 = vrot.slane %v2165, 4
          %v2167 = vmax.f32 %v2165, %v2166
          %v2168 = vrot.slane %v2167, 2
          %v2169 = vmax.f32 %v2167, %v2168
          %v2170 = vrot.slane %v2169, 1
          %v2171 = vmax.f32 %v2169, %v2170
          %v2172 = vsel %vm1996, %v1930, -inf
          %v2173 = vrot.slane %v2172, 4
          %v2174 = vmax.f32 %v2172, %v2173
          %v2175 = vrot.slane %v2174, 2
          %v2176 = vmax.f32 %v2174, %v2175
          %v2177 = vrot.slane %v2176, 1
          %v2178 = vmax.f32 %v2176, %v2177
          %v2179 = vsel %vm1996, %v1938, -inf
          %v2180 = vrot.slane %v2179, 4
          %v2181 = vmax.f32 %v2179, %v2180
          %v2182 = vrot.slane %v2181, 2
          %v2183 = vmax.f32 %v2181, %v2182
          %v2184 = vrot.slane %v2183, 1
          %v2185 = vmax.f32 %v2183, %v2184
          %v2186 = vsel %vm1996, %v1946, -inf
          %v2187 = vrot.slane %v2186, 4
          %v2188 = vmax.f32 %v2186, %v2187
          %v2189 = vrot.slane %v2188, 2
          %v2190 = vmax.f32 %v2188, %v2189
          %v2191 = vrot.slane %v2190, 1
          %v2192 = vmax.f32 %v2190, %v2191
          %v2193 = vsel %vm1996, %v1947, -inf
          %v2194 = vrot.slane %v2193, 4
          %v2195 = vmax.f32 %v2193, %v2194
          %v2196 = vrot.slane %v2195, 2
          %v2197 = vmax.f32 %v2195, %v2196
          %v2198 = vrot.slane %v2197, 1
          %v2199 = vmax.f32 %v2197, %v2198
          %v2200 = vsel %vm1996, %v1955, -inf
          %v2201 = vrot.slane %v2200, 4
          %v2202 = vmax.f32 %v2200, %v2201
          %v2203 = vrot.slane %v2202, 2
          %v2204 = vmax.f32 %v2202, %v2203
          %v2205 = vrot.slane %v2204, 1
          %v2206 = vmax.f32 %v2204, %v2205
          %v2207 = vsel %vm1996, %v1963, -inf
          %v2208 = vrot.slane %v2207, 4
          %v2209 = vmax.f32 %v2207, %v2208
          %v2210 = vrot.slane %v2209, 2
          %v2211 = vmax.f32 %v2209, %v2210
          %v2212 = vrot.slane %v2211, 1
          %v2213 = vmax.f32 %v2211, %v2212
          %v2214 = vsel %vm1996, %v1962, -inf
          %v2215 = vrot.slane %v2214, 4
          %v2216 = vmax.f32 %v2214, %v2215
          %v2217 = vrot.slane %v2216, 2
          %v2218 = vmax.f32 %v2216, %v2217
          %v2219 = vrot.slane %v2218, 1
          %v2220 = vmax.f32 %v2218, %v2219
          %v2221 = vsel %vm642, %v2003, -inf
          %v2222 = vsel %vm642, %v2031, -inf
          %v2223 = vmax.f32 %v2221, %v2222
          %v2224 = vsel %vm642, %v2010, -inf
          %v2225 = vsel %vm642, %v2038, -inf
          %v2226 = vmax.f32 %v2224, %v2225
          %v2227 = vsel %vm642, %v2017, -inf
          %v2228 = vsel %vm642, %v2045, -inf
          %v2229 = vmax.f32 %v2227, %v2228
          %v2230 = vsel %vm642, %v2024, -inf
          %v2231 = vsel %vm642, %v2052, -inf
          %v2232 = vmax.f32 %v2230, %v2231
          %v2233 = vsel %vm642, %v2059, -inf
          %v2234 = vsel %vm642, %v2087, -inf
          %v2235 = vmax.f32 %v2233, %v2234
          %v2236 = vsel %vm642, %v2066, -inf
          %v2237 = vsel %vm642, %v2094, -inf
          %v2238 = vmax.f32 %v2236, %v2237
          %v2239 = vsel %vm642, %v2073, -inf
          %v2240 = vsel %vm642, %v2101, -inf
          %v2241 = vmax.f32 %v2239, %v2240
          %v2242 = vsel %vm642, %v2080, -inf
          %v2243 = vsel %vm642, %v2108, -inf
          %v2244 = vmax.f32 %v2242, %v2243
          %v2245 = vsel %vm642, %v2115, -inf
          %v2246 = vsel %vm642, %v2143, -inf
          %v2247 = vmax.f32 %v2245, %v2246
          %v2248 = vsel %vm642, %v2122, -inf
          %v2249 = vsel %vm642, %v2150, -inf
          %v2250 = vmax.f32 %v2248, %v2249
          %v2251 = vsel %vm642, %v2129, -inf
          %v2252 = vsel %vm642, %v2157, -inf
          %v2253 = vmax.f32 %v2251, %v2252
          %v2254 = vsel %vm642, %v2136, -inf
          %v2255 = vsel %vm642, %v2164, -inf
          %v2256 = vmax.f32 %v2254, %v2255
          %v2257 = vsel %vm642, %v2171, -inf
          %v2258 = vsel %vm642, %v2199, -inf
          %v2259 = vmax.f32 %v2257, %v2258
          %v2260 = vsel %vm642, %v2178, -inf
          %v2261 = vsel %vm642, %v2206, -inf
          %v2262 = vmax.f32 %v2260, %v2261
          %v2263 = vsel %vm642, %v2185, -inf
          %v2264 = vsel %vm642, %v2213, -inf
          %v2265 = vmax.f32 %v2263, %v2264
          %v2266 = vsel %vm642, %v2192, -inf
          %v2267 = vsel %vm642, %v2220, -inf
          %v2268 = vmax.f32 %v2266, %v2267
          %v2269 = vld [vmem:[%s2] sm:$0x1]
          %v2271 = vlaneseq
          %v2272 = vshrl.u32 %v2271, 7
          %v2273 = vsub.s32 0, %v2272
          %v2274 = vrot.slane %v2269, %v2273
          %v2276 = vadd.f32 %v2223, %v2274
          %v2277 = vadd.f32 %v2226, %v2274
          %v2278 = vadd.f32 %v2229, %v2274
          %v2279 = vadd.f32 %v2232, %v2274
          %v2280 = vadd.f32 %v2235, %v2274
          %v2281 = vadd.f32 %v2238, %v2274
          %v2282 = vadd.f32 %v2241, %v2274
          %v2283 = vadd.f32 %v2244, %v2274
          %v2284 = vadd.f32 %v2247, %v2274
          %v2285 = vadd.f32 %v2250, %v2274
          %v2286 = vadd.f32 %v2253, %v2274
          %v2287 = vadd.f32 %v2256, %v2274
          %v2288 = vadd.f32 %v2259, %v2274
          %v2289 = vadd.f32 %v2262, %v2274
          %v2290 = vadd.f32 %v2265, %v2274
          %v2291 = vadd.f32 %v2268, %v2274
          %v2308 = vrot.slane %v2277, 7
          %vm2309 = vcmask 1041409
          %v2310 = vsel %vm2309, %v2308, %v2276
          %v2311 = vrot.slane %v2278, 6
          %vm2312 = vcmask 1042434
          %v2313 = vsel %vm2312, %v2311, %v2310
          %v2314 = vrot.slane %v2279, 5
          %vm2315 = vcmask 1043459
          %v2316 = vsel %vm2315, %v2314, %v2313
          %v2317 = vrot.slane %v2280, 4
          %vm2318 = vcmask 1044484
          %v2319 = vsel %vm2318, %v2317, %v2316
          %v2320 = vrot.slane %v2281, 3
          %vm2321 = vcmask 1045509
          %v2322 = vsel %vm2321, %v2320, %v2319
          %v2323 = vrot.slane %v2282, 2
          %vm2324 = vcmask 1046534
          %v2325 = vsel %vm2324, %v2323, %v2322
          %v2326 = vrot.slane %v2283, 1
          %vm2327 = vcmask 1047559
          %v2328 = vsel %vm2327, %v2326, %v2325
          %v2329 = vrot.slane %v2285, 7
          %v2330 = vsel %vm2309, %v2329, %v2284
          %v2331 = vrot.slane %v2286, 6
          %v2332 = vsel %vm2312, %v2331, %v2330
          %v2333 = vrot.slane %v2287, 5
          %v2334 = vsel %vm2315, %v2333, %v2332
          %v2335 = vrot.slane %v2288, 4
          %v2336 = vsel %vm2318, %v2335, %v2334
          %v2337 = vrot.slane %v2289, 3
          %v2338 = vsel %vm2321, %v2337, %v2336
          %v2339 = vrot.slane %v2290, 2
          %v2340 = vsel %vm2324, %v2339, %v2338
          %v2341 = vrot.slane %v2291, 1
          %v2342 = vsel %vm2327, %v2341, %v2340
          %2345 = vst.msk [vmem:[%s267] sm:$0xff] %vm642, %v2328
          %2346 = vst.msk [vmem:[%s267 + $0x8] sm:$0xff] %vm642, %v2342
          %v2347 = vsel %vm642, %v2328, 0.0
          %v2348 = vsel %vm642, %v2342, 0.0
          %v2349 = vadd.f32 %v2347, %v2348
          %v2350 = vrot.slane %v2349, 4
          %v2351 = vadd.f32 %v2349, %v2350
          %v2352 = vrot.slane %v2351, 2
          %v2353 = vadd.f32 %v2351, %v2352
          %v2354 = vrot.slane %v2353, 1
          %v2355 = vadd.f32 %v2353, %v2354
          %v2356 = vmul.f32 %v2276, %v2276
          %v2357 = vmul.f32 %v2277, %v2277
          %v2358 = vmul.f32 %v2278, %v2278
          %v2359 = vmul.f32 %v2279, %v2279
          %v2360 = vmul.f32 %v2280, %v2280
          %v2361 = vmul.f32 %v2281, %v2281
          %v2362 = vmul.f32 %v2282, %v2282
          %v2363 = vmul.f32 %v2283, %v2283
          %v2364 = vmul.f32 %v2284, %v2284
          %v2365 = vmul.f32 %v2285, %v2285
          %v2366 = vmul.f32 %v2286, %v2286
          %v2367 = vmul.f32 %v2287, %v2287
          %v2368 = vmul.f32 %v2288, %v2288
          %v2369 = vmul.f32 %v2289, %v2289
          %v2370 = vmul.f32 %v2290, %v2290
          %v2371 = vmul.f32 %v2291, %v2291
          %v2388 = vrot.slane %v2357, 7
          %v2389 = vsel %vm2309, %v2388, %v2356
          %v2390 = vrot.slane %v2358, 6
          %v2391 = vsel %vm2312, %v2390, %v2389
          %v2392 = vrot.slane %v2359, 5
          %v2393 = vsel %vm2315, %v2392, %v2391
          %v2394 = vrot.slane %v2360, 4
          %v2395 = vsel %vm2318, %v2394, %v2393
          %v2396 = vrot.slane %v2361, 3
          %v2397 = vsel %vm2321, %v2396, %v2395
          %v2398 = vrot.slane %v2362, 2
          %v2399 = vsel %vm2324, %v2398, %v2397
          %v2400 = vrot.slane %v2363, 1
          %v2401 = vsel %vm2327, %v2400, %v2399
          %v2402 = vrot.slane %v2365, 7
          %v2403 = vsel %vm2309, %v2402, %v2364
          %v2404 = vrot.slane %v2366, 6
          %v2405 = vsel %vm2312, %v2404, %v2403
          %v2406 = vrot.slane %v2367, 5
          %v2407 = vsel %vm2315, %v2406, %v2405
          %v2408 = vrot.slane %v2368, 4
          %v2409 = vsel %vm2318, %v2408, %v2407
          %v2410 = vrot.slane %v2369, 3
          %v2411 = vsel %vm2321, %v2410, %v2409
          %v2412 = vrot.slane %v2370, 2
          %v2413 = vsel %vm2324, %v2412, %v2411
          %v2414 = vrot.slane %v2371, 1
          %v2415 = vsel %vm2327, %v2414, %v2413
          %v2418 = vsel %vm642, %v2401, 0.0
          %v2419 = vsel %vm642, %v2415, 0.0
          %v2420 = vadd.f32 %v2418, %v2419
          %v2421 = vrot.slane %v2420, 4
          %v2422 = vadd.f32 %v2420, %v2421
          %v2423 = vrot.slane %v2422, 2
          %v2424 = vadd.f32 %v2422, %v2423
          %v2425 = vrot.slane %v2424, 1
          %v2426 = vadd.f32 %v2424, %v2425
          %v2428 = vrot.slane %v2426, 7
          %vm2430 = vcmask 1040384
          %v2431 = vsel %vm2430, %v2355, %v2428
          %2432 = vst.msk [vmem:[%s245] sm:$0x3] %vm1996, %v2431
        $region48: #{tpu_custom_call.1} parent=31 // pred_fallthru
          _
        %p2433 = scmp.lt.s32.totalorder %s24, 1
        %s2434 = scalar_select %p2433, %s24, 1
        %p2435 = scmp.lt.s32.totalorder %s25, 3
        %s2436 = scalar_select %p2435, %s25, 3
        %s2437 = smul.addr %s2436, 2
        %s2438 = smul.addr %s2434, 8
        %s2439 = sadd.s32 %s2437, %s2438
        %s2440 = smul.addr %s2439, 8
        %s2441 = scalar_lea.vmem %s3, %s2440
        %s2442 = sand.u32 %s150, 1
        %s2443 = scalar_lea.sflag [#allocation5], %s2442
        %s2444 = sand.u32 %s150, 1
        %s2445 = smul.addr %s2444, 2
        %s2446 = scalar_lea.vmem [#allocation4], %s2445
        // Predicated region
        $region49: #{tpu_custom_call.1} parent=31 // pred_check
          %p2447 = pneg %p132
        $region50: #{tpu_custom_call.1} parent=31 // pred_check_branch
          %2449 = sbr.rel (%p2447) target = $region52
        $region51: #{tpu_custom_call.1} parent=31 // pred_region
          _
        $region52: #{tpu_custom_call.1} parent=31 // pred_fallthru
          _
        // Predicated region
        $region53: #{tpu_custom_call.1} parent=31 // pred_check
          %p2450 = pneg %p160
        $region54: #{tpu_custom_call.1} parent=31 // pred_check_branch
          %2452 = sbr.rel (%p2450) target = $region56
        $region55: #{tpu_custom_call.1} parent=31 // pred_region
          %s2454 = ssub.s32 32, 32
          %2455 = vsyncadd %s2443, %s2454
          %s2456 = smul.addr %s24, 4
          %s2457 = sadd.s32 %s25, %s2456
          %s2458 = smul.addr %s2457, 32
          %s2459 = scalar_lea.hbm %s4, %s2458
          %s2461 = sshll.u32 %s2446, 4
          %s2462 = int_to_ptr.vmem [resolvable:$true] %s2461
          %2464 = dma.vmem_to_hbm [thread:$0]  %s2462, 32, %s2459, %s2443
        $region56: #{tpu_custom_call.1} parent=31 // pred_fallthru
          _
      $region32: #{tpu_custom_call.1} parent=5 // pred_fallthru
        _
      %p2465 = scmp.le.s32.totalorder 2, %s14
      // Predicated region
      $region57: #{tpu_custom_call.1} parent=5 // pred_check
        %p2466 = pneg %p2465
      $region58: #{tpu_custom_call.1} parent=5 // pred_check_branch
        %2468 = sbr.rel (%p2466) target = $region60
      $region59: #{tpu_custom_call.1} parent=5 // pred_region
        %s2469 = ssub.s32 %s14, 2
        // Predicated region
        $region61: #{tpu_custom_call.1} parent=59 // pred_check
          %p2470 = pneg %p138
        $region62: #{tpu_custom_call.1} parent=59 // pred_check_branch
          %2472 = sbr.rel (%p2470) target = $region64
        $region63: #{tpu_custom_call.1} parent=59 // pred_region
          %p2473 = scmp.lt.s32.totalorder %s27, 1
          %s2474 = scalar_select %p2473, %s27, 1
          %p2475 = scmp.lt.s32.totalorder %s28, 3
          %s2476 = scalar_select %p2475, %s28, 3
          %s2477 = smul.addr %s2476, 2
          %s2478 = smul.addr %s2474, 8
          %s2479 = sadd.s32 %s2477, %s2478
          %s2480 = smul.addr %s2479, 8
          %s2481 = scalar_lea.vmem %s3, %s2480
        $region64: #{tpu_custom_call.1} parent=59 // pred_fallthru
          _
        // Predicated region
        $region65: #{tpu_custom_call.1} parent=59 // pred_check
          %p2482 = pneg %p166
        $region66: #{tpu_custom_call.1} parent=59 // pred_check_branch
          %2484 = sbr.rel (%p2482) target = $region68
        $region67: #{tpu_custom_call.1} parent=59 // pred_region
          %s2485 = sand.u32 %s151, 1
          %s2486 = scalar_lea.sflag [#allocation5], %s2485
          %s2487 = sand.u32 %s151, 1
          %s2488 = smul.addr %s2487, 2
          %s2489 = scalar_lea.vmem [#allocation4], %s2488
          %2490 = dma.done %s2486, 32
        $region68: #{tpu_custom_call.1} parent=59 // pred_fallthru
          _
      $region60: #{tpu_custom_call.1} parent=5 // pred_fallthru
        _
    $region6: #{tpu_custom_call.1} parent=1 // loop_footer
      %s18 = sadd.s32 1, %s14
    $region7: #{tpu_custom_call.1} parent=1 // loop_footer_branch
      %13 = sbr.rel target = $region3
    $region8: #{tpu_custom_call.1} parent=1 // loop_exit
      _
    %2491 = vsyncpa [#allocation5], 1
    %s2492 = scalar_lea.sflag [#allocation5], 1
    %2493 = vsyncpa %s2492, 1

</llo_original>
